<compile_context>
chip_gen: v6e
topology: v6e:2x2x1
jax: 0.10.0
libtpu: 0.0.40
codegen_flags: <defaults>
</compile_context>

<pallas_src>
import functools

import jax
import jax.numpy as jnp
from jax.experimental import pallas as pl
from jax.experimental.pallas import tpu as pltpu


def _round_up(x, m):
    return ((x + m - 1) // m) * m


def _pick_tm(M, tm_req, min_grid=4):
    """Row tile: multiple of 8, >= min_grid grid steps (pipelining / v7x megacore),
    and -- when M permits -- a divisor of M so the wrapper never pads through HBM."""
    tm = min(_round_up(tm_req, 8), _round_up(M, 8))
    while tm > 8 and -(-M // tm) < min_grid:
        tm = max(8, _round_up(tm // 2, 8))
    if M % 8 == 0 and M % tm != 0:
        for cand in range(tm, 7, -8):
            if M % cand == 0:
                tm = cand
                break
    return tm


def _vmem_limit_bytes(tm, D, c_pad, c_store):
    """Double-buffered tile footprint + compiler headroom; generation-safe cap."""
    bf16_b, f32_b = 2, 4
    per_step = (3 * tm * D * bf16_b        # trend / query / read_query tiles
                + tm * D * f32_b           # season tile
                + tm * D * f32_b           # season_n output tile
                + tm * c_store * f32_b)    # decoder+sigma output tile
    resident = (D * D * bf16_b             # W_trend
                + 3 * D * c_pad * bf16_b   # decoder blocks
                + 2 * D * f32_b            # b_trend + w_sigma row
                + c_pad * f32_b)           # padded decoder bias
    need = 2 * (per_step + resident) + (8 << 20)
    return int(min(max(need, 16 << 20), 48 << 20))


def _transformer_var_kernel(trend_ref, season_ref, query_ref, readq_ref,
                            wt_ref, bt_ref, ws_ref,
                            wdq_ref, wdt_ref, wdr_ref, bd_ref,
                            out_ref, seasonn_ref, *, c_out, c_store):
    # trend = self.trend_linear(trend)   (bf16 operands -> MXU, f32 accumulate)
    trend_p = (jnp.dot(trend_ref[...], wt_ref[...],
                       preferred_element_type=jnp.float32)
               + bt_ref[...])

    # season = F.normalize(season, dim=-1) == x / max(||x||, 1e-12)
    # Fully f32 (v5e VPU/EUP are f32-only).  rsqrt runs on the EUP slot; clamping the
    # *squared* norm at eps^2 = 1e-24 matches torch's clamp_min(eps) on the norm.
    season = season_ref[...]
    sumsq = jnp.sum(season * season, axis=-1, keepdims=True)
    season_n = season * jax.lax.rsqrt(jnp.maximum(sumsq, 1e-24))

    # sigma = self.sigma_projection(season_n): a (tm,D)x(D,1) matmul would waste the MXU,
    # so do it as a VPU multiply + lane reduction (w_sigma is passed as a (1,D) row;
    # b_sigma is folded into bd_ref[0, c_out]).
    sigma = jnp.sum(season_n * ws_ref[...], axis=-1, keepdims=True)

    # out = self.weak_decoder(torch.cat((query, trend, read_query), dim=-1))
    # concat + one (3D x C) matmul == sum of three (D x C) matmuls; weights are padded to
    # a lane-dense 128-column slab for the MXU, but only the useful columns are stored.
    out = (jnp.dot(query_ref[...], wdq_ref[...], preferred_element_type=jnp.float32)
           + jnp.dot(trend_p.astype(wdt_ref.dtype), wdt_ref[...],
                     preferred_element_type=jnp.float32)
           + jnp.dot(readq_ref[...], wdr_ref[...], preferred_element_type=jnp.float32)
           + bd_ref[...])

    # Fold sigma into lane column `c_out`: that column's weights are zero and its bias is
    # b_sigma, so adding yields sigma_dot + b_sigma.
    col = jax.lax.broadcasted_iota(jnp.int32, out.shape, 1)
    out = out + jnp.where(col == c_out, sigma, 0.0)

    # Store only the useful columns (c_out decoder cols + sigma, rounded up to 8) -- the
    # HBM output array is (M, c_store), so the zero padding never touches HBM.
    out_ref[...] = out[:, :c_store].astype(out_ref.dtype)
    seasonn_ref[...] = season_n.astype(seasonn_ref.dtype)


def transformer_var_pallas(trend, season, query, read_query, params, *, tm=1024):
    """trend/season/query/read_query: (M, D) float32. Returns (out, sigma, season_n)."""
    M, D = trend.shape
    c_out = params["wd_q"].shape[1]
    c_pad = 128                               # in-vreg MXU width (never written to HBM)
    c_store = _round_up(c_out + 1, 8)         # HBM width: decoder cols + sigma col

    tm = _pick_tm(M, tm)
    m_pad = _round_up(M, tm)
    if m_pad != M:
        # Fallback only when M is not a multiple of 8 (production shapes should avoid this).
        pad = ((0, m_pad - M), (0, 0))
        trend, season = jnp.pad(trend, pad), jnp.pad(season, pad)
        query, read_query = jnp.pad(query, pad), jnp.pad(read_query, pad)

    bf16 = jnp.bfloat16
    # bf16 operands for the MXU path; season stays f32 (normalize precision / v5e VPU).
    # These casts fuse into their producers when the caller is jitted (see forward()).
    trend_b = trend.astype(bf16)
    query_b = query.astype(bf16)
    readq_b = read_query.astype(bf16)
    w_trend = params["w_trend"].astype(bf16)
    b_trend = params["b_trend"].astype(jnp.float32)
    ws_row = params["w_sigma"].reshape(1, D).astype(jnp.float32)

    def pad_cols(w):
        return jnp.pad(w, ((0, 0), (0, c_pad - c_out))).astype(bf16)

    wd_q = pad_cols(params["wd_q"])
    wd_t = pad_cols(params["wd_t"])
    wd_r = pad_cols(params["wd_r"])
    b_dec = jnp.zeros((1, c_pad), jnp.float32)
    b_dec = b_dec.at[0, :c_out].set(params["b_dec"].reshape(-1).astype(jnp.float32))
    b_dec = b_dec.at[0, c_out].set(params["b_sigma"].reshape(()).astype(jnp.float32))

    row = lambda i: (i, 0)     # tiled over rows
    rep = lambda i: (0, 0)     # resident (weights / biases), constant index_map

    kernel = functools.partial(_transformer_var_kernel, c_out=c_out, c_store=c_store)

    out_store, season_n_pad = pl.pallas_call(
        kernel,
        out_shape=(
            jax.ShapeDtypeStruct((m_pad, c_store), jnp.float32),
            jax.ShapeDtypeStruct((m_pad, D), jnp.float32),
        ),
        grid=(m_pad // tm,),
        in_specs=[
            pl.BlockSpec((tm, D), row),        # trend (bf16)
            pl.BlockSpec((tm, D), row),        # season (f32, for normalize)
            pl.BlockSpec((tm, D), row),        # query (bf16)
            pl.BlockSpec((tm, D), row),        # read_query (bf16)
            pl.BlockSpec((D, D), rep),         # W_trend (bf16)
            pl.BlockSpec((1, D), rep),         # b_trend (f32)
            pl.BlockSpec((1, D), rep),         # w_sigma as a (1,D) row (f32)
            pl.BlockSpec((D, c_pad), rep),     # W_dec query block (bf16, lane-padded)
            pl.BlockSpec((D, c_pad), rep),     # W_dec trend block
            pl.BlockSpec((D, c_pad), rep),     # W_dec read_query block
            pl.BlockSpec((1, c_pad), rep),     # b_dec (+ b_sigma folded at col c_out)
        ],
        out_specs=(
            pl.BlockSpec((tm, c_store), row),  # last dim == full array dim (8,128 rule OK)
            pl.BlockSpec((tm, D), row),
        ),
        compiler_params=pltpu.CompilerParams(
            dimension_semantics=("parallel",),
            vmem_limit_bytes=_vmem_limit_bytes(tm, D, c_pad, c_store)),
    )(trend_b, season, query_b, readq_b,
      w_trend, b_trend, ws_row,
      wd_q, wd_t, wd_r, b_dec)

    # Trivial slices on a narrow (M, c_store) array; they fuse with downstream reshapes.
    out = out_store[:M, :c_out]
    sigma = out_store[:M, c_out:c_out + 1]
    season_n = season_n_pad[:M]
    return out, sigma, season_n


def init_params(key, enc_in, d_model, c_out, n_memory):
    ks = jax.random.split(key, 10)
    s = 0.1
    return {
        # --- placeholder encoder / memory (source not provided) ---
        "we_trend": s * jax.random.normal(ks[0], (enc_in, d_model), jnp.float32),
        "we_season": s * jax.random.normal(ks[1], (enc_in, d_model), jnp.float32),
        "we_query": s * jax.random.normal(ks[2], (enc_in, d_model), jnp.float32),
        "m_items": s * jax.random.normal(ks[3], (n_memory, d_model), jnp.float32),
        # --- TransformerVar parameters (shapes per __init__) ---
        "w_trend": s * jax.random.normal(ks[4], (d_model, d_model), jnp.float32),
        "b_trend": s * jax.random.normal(ks[5], (1, d_model), jnp.float32),
        "w_sigma": s * jax.random.normal(ks[6], (d_model, 1), jnp.float32),
        "b_sigma": s * jax.random.normal(ks[7], (1, 1), jnp.float32),
        # weak_decoder: Linear(3*d_model, c_out), split into the 3 row-blocks matching
        # the cat(query, trend, read_query) order of the transposed (3*d_model, c_out) weight.
        "wd_q": s * jax.random.normal(ks[8], (d_model, c_out), jnp.float32),
        "wd_t": s * jax.random.normal(ks[9], (d_model, c_out), jnp.float32),
        "wd_r": s * jax.random.normal(jax.random.fold_in(key, 99),
                                      (d_model, c_out), jnp.float32),
        "b_dec": s * jax.random.normal(jax.random.fold_in(key, 100),
                                       (1, c_out), jnp.float32),
    }


def transformer_var_forward(x, params, d_model, mode="test"):
    """x: (N, L, enc_in) float32 -> dict matching TransformerVar.forward outputs.

    Jit this function (see __main__) so the bf16 casts inside transformer_var_pallas fuse
    into the encoder matmuls instead of lowering as standalone HBM convert passes."""
    N, L, _ = x.shape
    M = N * L

    # TODO(synk): STEncoder source not provided; deterministic linear-embedding
    # placeholders produce (trend, season, query) of shape (N, L, d_model).
    trend = x @ params["we_trend"]
    season = x @ params["we_season"]
    query = x @ params["we_query"]

    # TODO(synk): MemoryModule (point_mem_module) read not provided; placeholder
    # read_query = season, m_items = fixed memory bank.
    read_query = season
    m_items = params["m_items"]

    out, sigma, season_n = transformer_var_pallas(
        trend.reshape(M, d_model),
        season.reshape(M, d_model),
        query.reshape(M, d_model),
        read_query.reshape(M, d_model),
        params,
    )

    # TODO(synk): ContrastLoss source not provided; losses returned as zeros.
    zero = jnp.zeros((), jnp.float32)

    return {
        "out": out.reshape(N, L, -1),
        "m_items": m_items,
        "queries": season_n.reshape(N, L, d_model),
        "contrastloss": zero,
        "gather_loss": zero,
        "kld_loss": zero,
        "sigma": sigma.reshape(N, L),   # matches .view(s[0], s[1])
    }


if __name__ == "__main__":
    # Small, fast demo shapes: d_model multiple of 128 (lane-dense), M = 512 rows, and the
    # tm picker gives a 4-step grid (>=2 steps per TensorCore on v7x megacore).
    N, L, enc_in = 4, 128, 8
    d_model, c_out, n_memory = 256, 4, 16

    key = jax.random.PRNGKey(0)
    kx, kp = jax.random.split(key)
    x = jax.random.normal(kx, (N, L, enc_in), jnp.float32)
    params = init_params(kp, enc_in, d_model, c_out, n_memory)

    fwd = jax.jit(functools.partial(transformer_var_forward,
                                    d_model=d_model, mode="test"))
    result = fwd(x, params)
    jax.block_until_ready(result)

    assert result["out"].shape == (N, L, c_out)
    assert result["sigma"].shape == (N, L)
    assert result["queries"].shape == (N, L, d_model)

    # Pure-JAX f32 reference of the fused path (same placeholder encoder / memory).
    M = N * L
    trend_r = (x @ params["we_trend"]).reshape(M, d_model)
    season_r = (x @ params["we_season"]).reshape(M, d_model)
    query_r = (x @ params["we_query"]).reshape(M, d_model)
    readq_r = season_r
    trend_p_r = trend_r @ params["w_trend"] + params["b_trend"]
    nrm = jnp.sqrt(jnp.sum(season_r * season_r, axis=-1, keepdims=True))
    season_n_r = season_r / jnp.maximum(nrm, 1e-12)
    sigma_r = season_n_r @ params["w_sigma"] + params["b_sigma"]
    out_r = (query_r @ params["wd_q"] + trend_p_r @ params["wd_t"]
             + readq_r @ params["wd_r"] + params["b_dec"])

    assert float(jnp.max(jnp.abs(result["queries"].reshape(M, d_model) - season_n_r))) < 1e-3
    assert float(jnp.max(jnp.abs(result["sigma"].reshape(M, 1) - sigma_r))) < 1e-3
    # bf16 matmul operands (f32 accumulation) -> loose tolerance on the decoder output.
    assert float(jnp.max(jnp.abs(result["out"].reshape(M, c_out) - out_r))) < 0.1

    print("KERNEL_OK")
</pallas_src>

<mosaic_0001>
module attributes {stable_mosaic.version = 11 : i64} {
  func.func @_transformer_var_kernel(%arg0: i32, %arg1: memref<128x256xbf16, #tpu.memory_space<vmem>>, %arg2: memref<128x256xf32, #tpu.memory_space<vmem>>, %arg3: memref<128x256xbf16, #tpu.memory_space<vmem>>, %arg4: memref<128x256xbf16, #tpu.memory_space<vmem>>, %arg5: memref<256x256xbf16, #tpu.memory_space<vmem>>, %arg6: memref<1x256xf32, #tpu.memory_space<vmem>>, %arg7: memref<1x256xf32, #tpu.memory_space<vmem>>, %arg8: memref<256x128xbf16, #tpu.memory_space<vmem>>, %arg9: memref<256x128xbf16, #tpu.memory_space<vmem>>, %arg10: memref<256x128xbf16, #tpu.memory_space<vmem>>, %arg11: memref<1x128xf32, #tpu.memory_space<vmem>>, %arg12: memref<128x8xf32, #tpu.memory_space<vmem>>, %arg13: memref<128x256xf32, #tpu.memory_space<vmem>>) attributes {dimension_semantics = [#tpu.dimension_semantics<parallel>], iteration_bounds = array<i64: 4>, scalar_prefetch = 0 : i64, scratch_operands = 0 : i64, tpu.core_type = #tpu.core_type<tc>, window_params = [{transform_indices = @transform_0, window_bounds = array<i64: 128, 256>}, {transform_indices = @transform_1, window_bounds = array<i64: 128, 256>}, {transform_indices = @transform_2, window_bounds = array<i64: 128, 256>}, {transform_indices = @transform_3, window_bounds = array<i64: 128, 256>}, {pipeline_mode = #tpu.pipeline_mode<synchronous>, transform_indices = @transform_4, window_bounds = array<i64: 256, 256>}, {pipeline_mode = #tpu.pipeline_mode<synchronous>, transform_indices = @transform_5, window_bounds = array<i64: 1, 256>}, {pipeline_mode = #tpu.pipeline_mode<synchronous>, transform_indices = @transform_6, window_bounds = array<i64: 1, 256>}, {pipeline_mode = #tpu.pipeline_mode<synchronous>, transform_indices = @transform_7, window_bounds = array<i64: 256, 128>}, {pipeline_mode = #tpu.pipeline_mode<synchronous>, transform_indices = @transform_8, window_bounds = array<i64: 256, 128>}, {pipeline_mode = #tpu.pipeline_mode<synchronous>, transform_indices = @transform_9, window_bounds = array<i64: 256, 128>}, {pipeline_mode = #tpu.pipeline_mode<synchronous>, transform_indices = @transform_10, window_bounds = array<i64: 1, 128>}, {transform_indices = @transform_11, window_bounds = array<i64: 128, 8>}, {transform_indices = @transform_12, window_bounds = array<i64: 128, 256>}]} {
    %c0 = arith.constant 0 : index
    %c0_0 = arith.constant 0 : index
    %0 = vector.load %arg1[%c0, %c0_0] : memref<128x256xbf16, #tpu.memory_space<vmem>>, vector<128x256xbf16>
    %c0_1 = arith.constant 0 : index
    %c0_2 = arith.constant 0 : index
    %1 = vector.load %arg5[%c0_1, %c0_2] : memref<256x256xbf16, #tpu.memory_space<vmem>>, vector<256x256xbf16>
    %cst = arith.constant dense<0.000000e+00> : vector<128x256xf32>
    %2 = tpu.matmul %0, %1, %cst {dimension_numbers = #tpu.dot_dimension_numbers<[1], [0], [0], [1], [0, 0, 1, 1], [], []>} : vector<128x256xbf16>, vector<256x256xbf16>, vector<128x256xf32> -> vector<128x256xf32>
    %c0_3 = arith.constant 0 : index
    %c0_4 = arith.constant 0 : index
    %3 = vector.load %arg6[%c0_3, %c0_4] : memref<1x256xf32, #tpu.memory_space<vmem>>, vector<1x256xf32>
    %4 = vector.broadcast %3 : vector<1x256xf32> to vector<128x256xf32>
    %5 = arith.addf %2, %4 : vector<128x256xf32>
    %c0_5 = arith.constant 0 : index
    %c0_6 = arith.constant 0 : index
    %6 = vector.load %arg2[%c0_5, %c0_6] : memref<128x256xf32, #tpu.memory_space<vmem>>, vector<128x256xf32>
    %7 = arith.mulf %6, %6 : vector<128x256xf32>
    %cst_7 = arith.constant dense<0.000000e+00> : vector<128xf32>
    %8 = vector.multi_reduction <add>, %7, %cst_7 [1] : vector<128x256xf32> to vector<128xf32>
    %9 = vector.shape_cast %8 : vector<128xf32> to vector<128x1xf32>
    %cst_8 = arith.constant 1.000000e-24 : f32
    %10 = vector.broadcast %cst_8 : f32 to vector<128x1xf32>
    %11 = arith.maximumf %9, %10 : vector<128x1xf32>
    %12 = math.rsqrt %11 : vector<128x1xf32>
    %13 = vector.broadcast %12 : vector<128x1xf32> to vector<128x256xf32>
    %14 = arith.mulf %6, %13 : vector<128x256xf32>
    %c0_9 = arith.constant 0 : index
    %c0_10 = arith.constant 0 : index
    %15 = vector.load %arg7[%c0_9, %c0_10] : memref<1x256xf32, #tpu.memory_space<vmem>>, vector<1x256xf32>
    %16 = vector.broadcast %15 : vector<1x256xf32> to vector<128x256xf32>
    %17 = arith.mulf %14, %16 : vector<128x256xf32>
    %cst_11 = arith.constant dense<0.000000e+00> : vector<128xf32>
    %18 = vector.multi_reduction <add>, %17, %cst_11 [1] : vector<128x256xf32> to vector<128xf32>
    %19 = vector.shape_cast %18 : vector<128xf32> to vector<128x1xf32>
    %c0_12 = arith.constant 0 : index
    %c0_13 = arith.constant 0 : index
    %20 = vector.load %arg3[%c0_12, %c0_13] : memref<128x256xbf16, #tpu.memory_space<vmem>>, vector<128x256xbf16>
    %c0_14 = arith.constant 0 : index
    %c0_15 = arith.constant 0 : index
    %21 = vector.load %arg8[%c0_14, %c0_15] : memref<256x128xbf16, #tpu.memory_space<vmem>>, vector<256x128xbf16>
    %cst_16 = arith.constant dense<0.000000e+00> : vector<128x128xf32>
    %22 = tpu.matmul %20, %21, %cst_16 {dimension_numbers = #tpu.dot_dimension_numbers<[1], [0], [0], [1], [0, 0, 1, 1], [], []>} : vector<128x256xbf16>, vector<256x128xbf16>, vector<128x128xf32> -> vector<128x128xf32>
    %23 = arith.truncf %5 : vector<128x256xf32> to vector<128x256xbf16>
    %c0_17 = arith.constant 0 : index
    %c0_18 = arith.constant 0 : index
    %24 = vector.load %arg9[%c0_17, %c0_18] : memref<256x128xbf16, #tpu.memory_space<vmem>>, vector<256x128xbf16>
    %cst_19 = arith.constant dense<0.000000e+00> : vector<128x128xf32>
    %25 = tpu.matmul %23, %24, %cst_19 {dimension_numbers = #tpu.dot_dimension_numbers<[1], [0], [0], [1], [0, 0, 1, 1], [], []>} : vector<128x256xbf16>, vector<256x128xbf16>, vector<128x128xf32> -> vector<128x128xf32>
    %26 = arith.addf %22, %25 : vector<128x128xf32>
    %c0_20 = arith.constant 0 : index
    %c0_21 = arith.constant 0 : index
    %27 = vector.load %arg4[%c0_20, %c0_21] : memref<128x256xbf16, #tpu.memory_space<vmem>>, vector<128x256xbf16>
    %c0_22 = arith.constant 0 : index
    %c0_23 = arith.constant 0 : index
    %28 = vector.load %arg10[%c0_22, %c0_23] : memref<256x128xbf16, #tpu.memory_space<vmem>>, vector<256x128xbf16>
    %cst_24 = arith.constant dense<0.000000e+00> : vector<128x128xf32>
    %29 = tpu.matmul %27, %28, %cst_24 {dimension_numbers = #tpu.dot_dimension_numbers<[1], [0], [0], [1], [0, 0, 1, 1], [], []>} : vector<128x256xbf16>, vector<256x128xbf16>, vector<128x128xf32> -> vector<128x128xf32>
    %30 = arith.addf %26, %29 : vector<128x128xf32>
    %c0_25 = arith.constant 0 : index
    %c0_26 = arith.constant 0 : index
    %31 = vector.load %arg11[%c0_25, %c0_26] : memref<1x128xf32, #tpu.memory_space<vmem>>, vector<1x128xf32>
    %32 = vector.broadcast %31 : vector<1x128xf32> to vector<128x128xf32>
    %33 = arith.addf %30, %32 : vector<128x128xf32>
    %34 = tpu.iota {dimensions = array<i32: 1>} : vector<128x128xi32>
    %c4_i32 = arith.constant 4 : i32
    %35 = vector.broadcast %c4_i32 : i32 to vector<128x128xi32>
    %36 = arith.cmpi eq, %34, %35 : vector<128x128xi32>
    %cst_27 = arith.constant 0.000000e+00 : f32
    %37 = vector.shape_cast %19 : vector<128x1xf32> to vector<128x1xf32>
    %38 = vector.broadcast %37 : vector<128x1xf32> to vector<128x128xf32>
    %39 = vector.broadcast %cst_27 : f32 to vector<128x128xf32>
    %40 = arith.select %36, %38, %39 : vector<128x128xi1>, vector<128x128xf32>
    %41 = arith.addf %33, %40 : vector<128x128xf32>
    %42 = vector.extract_strided_slice %41 {offsets = [0, 0], sizes = [128, 8], strides = [1, 1]} : vector<128x128xf32> to vector<128x8xf32>
    %c0_28 = arith.constant 0 : index
    %c0_29 = arith.constant 0 : index
    %43 = vector.load %arg12[%c0_28, %c0_29] : memref<128x8xf32, #tpu.memory_space<vmem>>, vector<128x8xf32>
    tpu.vector_store %arg12[%c0_28, %c0_29], %42 {strides = array<i32>} : memref<128x8xf32, #tpu.memory_space<vmem>>, vector<128x8xf32>,
    %c0_30 = arith.constant 0 : index
    %c0_31 = arith.constant 0 : index
    %44 = vector.load %arg13[%c0_30, %c0_31] : memref<128x256xf32, #tpu.memory_space<vmem>>, vector<128x256xf32>
    tpu.vector_store %arg13[%c0_30, %c0_31], %14 {strides = array<i32>} : memref<128x256xf32, #tpu.memory_space<vmem>>, vector<128x256xf32>,
    return
  }
  func.func @transform_0(%arg0: i32) -> (i32, i32) {
    %c0_i32 = arith.constant 0 : i32
    %c0_i32_0 = arith.constant 0 : i32
    return %arg0, %c0_i32 : i32, i32
  }
  func.func @transform_1(%arg0: i32) -> (i32, i32) {
    %c0_i32 = arith.constant 0 : i32
    %c0_i32_0 = arith.constant 0 : i32
    return %arg0, %c0_i32 : i32, i32
  }
  func.func @transform_2(%arg0: i32) -> (i32, i32) {
    %c0_i32 = arith.constant 0 : i32
    %c0_i32_0 = arith.constant 0 : i32
    return %arg0, %c0_i32 : i32, i32
  }
  func.func @transform_3(%arg0: i32) -> (i32, i32) {
    %c0_i32 = arith.constant 0 : i32
    %c0_i32_0 = arith.constant 0 : i32
    return %arg0, %c0_i32 : i32, i32
  }
  func.func @transform_4(%arg0: i32) -> (i32, i32) {
    %c0_i32 = arith.constant 0 : i32
    %c0_i32_0 = arith.constant 0 : i32
    %c0_i32_1 = arith.constant 0 : i32
    return %c0_i32, %c0_i32_0 : i32, i32
  }
  func.func @transform_5(%arg0: i32) -> (i32, i32) {
    %c0_i32 = arith.constant 0 : i32
    %c0_i32_0 = arith.constant 0 : i32
    %c0_i32_1 = arith.constant 0 : i32
    return %c0_i32, %c0_i32_0 : i32, i32
  }
  func.func @transform_6(%arg0: i32) -> (i32, i32) {
    %c0_i32 = arith.constant 0 : i32
    %c0_i32_0 = arith.constant 0 : i32
    %c0_i32_1 = arith.constant 0 : i32
    return %c0_i32, %c0_i32_0 : i32, i32
  }
  func.func @transform_7(%arg0: i32) -> (i32, i32) {
    %c0_i32 = arith.constant 0 : i32
    %c0_i32_0 = arith.constant 0 : i32
    %c0_i32_1 = arith.constant 0 : i32
    return %c0_i32, %c0_i32_0 : i32, i32
  }
  func.func @transform_8(%arg0: i32) -> (i32, i32) {
    %c0_i32 = arith.constant 0 : i32
    %c0_i32_0 = arith.constant 0 : i32
    %c0_i32_1 = arith.constant 0 : i32
    return %c0_i32, %c0_i32_0 : i32, i32
  }
  func.func @transform_9(%arg0: i32) -> (i32, i32) {
    %c0_i32 = arith.constant 0 : i32
    %c0_i32_0 = arith.constant 0 : i32
    %c0_i32_1 = arith.constant 0 : i32
    return %c0_i32, %c0_i32_0 : i32, i32
  }
  func.func @transform_10(%arg0: i32) -> (i32, i32) {
    %c0_i32 = arith.constant 0 : i32
    %c0_i32_0 = arith.constant 0 : i32
    %c0_i32_1 = arith.constant 0 : i32
    return %c0_i32, %c0_i32_0 : i32, i32
  }
  func.func @transform_11(%arg0: i32) -> (i32, i32) {
    %c0_i32 = arith.constant 0 : i32
    %c0_i32_0 = arith.constant 0 : i32
    return %arg0, %c0_i32 : i32, i32
  }
  func.func @transform_12(%arg0: i32) -> (i32, i32) {
    %c0_i32 = arith.constant 0 : i32
    %c0_i32_0 = arith.constant 0 : i32
    return %arg0, %c0_i32 : i32, i32
  }
}

</mosaic_0001>

<llo_original>
// kernel: transformer_var_forward.1
$region0: #{transformer_var_forward.1}
  #allocation0 [shape = 'u32[]', space=smem, size = 0x4, offset = 0x4, fixed_abs, tag = 'smem constant byte address 0x4 - core index']
  #allocation1 [shape = 'u32[144,128]{1,0:T(1,128)}', space=vmem, size = 0x12000, scoped, tag = 'internal scratch']
  %s0 = inlined_call_operand.vmem [shape: bf16[512,256], index: 0, kind: input, shape index: {}]
  %s1 = inlined_call_operand.vmem [shape: f32[512,256], index: 1, kind: input, shape index: {}]
  %s2 = inlined_call_operand.vmem [shape: bf16[512,256], index: 2, kind: input, shape index: {}]
  %s3 = inlined_call_operand.vmem [shape: bf16[512,256], index: 3, kind: input, shape index: {}]
  %s4 = inlined_call_operand.vmem [shape: bf16[256,256], index: 4, kind: input, shape index: {}]
  %s5 = inlined_call_operand.vmem [shape: f32[1,256], index: 5, kind: input, shape index: {}]
  %s6 = inlined_call_operand.vmem [shape: f32[1,256], index: 6, kind: input, shape index: {}]
  %s7 = inlined_call_operand.vmem [shape: bf16[256,128], index: 7, kind: input, shape index: {}]
  %s8 = inlined_call_operand.vmem [shape: bf16[256,128], index: 8, kind: input, shape index: {}]
  %s9 = inlined_call_operand.vmem [shape: bf16[256,128], index: 9, kind: input, shape index: {}]
  %s10 = inlined_call_operand.vmem [shape: f32[1,128], index: 10, kind: input, shape index: {}]
  %s11 = inlined_call_operand.vmem [shape: f32[512,8], index: 11, kind: output, shape index: {0}]
  %s12 = inlined_call_operand.hbm [shape: f32[512,256], index: 12, kind: output, shape index: {1}]
  %13 = xla_tuple %s11, %s12
  %s14 = sld [smem:[#allocation0]]
  $region85: #{transformer_var_forward.1} parent=0
    _
  %s16 = ssub.s32 1, %s14
  %s17 = scalar_select 0, %s16, %s14
  $region1: #{transformer_var_forward.1} parent=0
    #allocation2 [shape = 'u8[262144]{0}', space=vmem, size = 0x40000, scoped, tag = 'output window, operand 1']
    #allocation3 [shape = 's32[2]{0}', space=sflag, size = 0x8, scoped, tag = 'scoped memory for transformer_var_forward.1']
    %18 = vsyncpa [#allocation3], 0
    %s19 = scalar_lea.sflag [#allocation3], 1
    %20 = vsyncpa %s19, 0
    loop: start=0, step=1, limit=6
    $region2: #{transformer_var_forward.1} parent=1 // loop_pre_header
      _
    $region3: #{transformer_var_forward.1} parent=1 // loop_header
      %s22 = sphi 0, %s26
      %p23 = scmp.ge.s32.totalorder %s22, 6
      %s32 = sphi 0, %s34
      %s35 = sphi 0, %s32
      %s36 = sphi 0, %s35
      %s52 = sphi 0, %s36
      %s58 = sphi 0, %s60
      %s61 = sphi 0, %s58
      %s62 = sphi 0, %s61
      %s78 = sphi 0, %s62
      %s84 = sphi 0, %s86
      %s87 = sphi 0, %s84
      %s88 = sphi 0, %s87
      %s104 = sphi 0, %s88
      %s110 = sphi 0, %s112
      %s113 = sphi 0, %s110
      %s114 = sphi 0, %s113
      %s130 = sphi 0, %s114
      %s134 = sphi 0, %s134
      %s136 = sphi 0, %s134
      %s137 = sphi 0, %s136
      %s151 = sphi 0, %s137
      %s155 = sphi 0, %s155
      %s157 = sphi 0, %s155
      %s158 = sphi 0, %s157
      %s172 = sphi 0, %s158
      %s176 = sphi 0, %s176
      %s178 = sphi 0, %s176
      %s179 = sphi 0, %s178
      %s193 = sphi 0, %s179
      %s197 = sphi 0, %s197
      %s199 = sphi 0, %s197
      %s200 = sphi 0, %s199
      %s214 = sphi 0, %s200
      %s218 = sphi 0, %s218
      %s220 = sphi 0, %s218
      %s221 = sphi 0, %s220
      %s235 = sphi 0, %s221
      %s239 = sphi 0, %s239
      %s241 = sphi 0, %s239
      %s242 = sphi 0, %s241
      %s256 = sphi 0, %s242
      %s260 = sphi 0, %s260
      %s262 = sphi 0, %s260
      %s263 = sphi 0, %s262
      %s277 = sphi 0, %s263
      %s283 = sphi 0, %s285
      %s286 = sphi 0, %s283
      %s287 = sphi 0, %s286
      %s303 = sphi 0, %s287
      %s309 = sphi 0, %s311
      %s312 = sphi 0, %s309
      %s313 = sphi 0, %s312
      %s329 = sphi 0, %s313
    $region4: #{transformer_var_forward.1} parent=1 // loop_header_branch
      %25 = sbr.rel (%p23) target = $region8
    $region5: #{transformer_var_forward.1} parent=1 // loop_body
      %s27 = ssub.s32 %s22, 1
      %s28 = ssub.s32 %s22, 2
      %s29 = sadd.s32 %s22, 1
      %s30 = ssub.s32 %s22, %s29
      %p31 = scmp.eq.s32.totalorder %s30, 0
      %s33 = sadd.s32 %s32, 1
      %s34 = scalar_select %p31, %s32, %s33
      %p37 = pneg %p31
      %p38 = scmp.eq.s32.totalorder %s22, 3
      %p39 = por %p37, %p38
      %p40 = scmp.ne.s32.totalorder %s32, %s35
      %p41 = scmp.eq.s32.totalorder %s22, 0
      %p42 = por %p40, %p41
      %p43 = scmp.ne.s32.totalorder %s32, %s35
      %p44 = scmp.eq.s32.totalorder %s27, 3
      %p45 = por %p43, %p44
      %p46 = scmp.ne.s32.totalorder %s35, %s36
      %p47 = scmp.eq.s32.totalorder %s27, 0
      %p48 = por %p46, %p47
      %p49 = scmp.ne.s32.totalorder %s35, %s36
      %p50 = scmp.eq.s32.totalorder %s28, 3
      %p51 = por %p49, %p50
      %p53 = scmp.ne.s32.totalorder %s36, %s52
      %p54 = scmp.eq.s32.totalorder %s28, 0
      %p55 = por %p53, %p54
      %s56 = ssub.s32 %s22, %s29
      %p57 = scmp.eq.s32.totalorder %s56, 0
      %s59 = sadd.s32 %s58, 1
      %s60 = scalar_select %p57, %s58, %s59
      %p63 = pneg %p57
      %p64 = scmp.eq.s32.totalorder %s22, 3
      %p65 = por %p63, %p64
      %p66 = scmp.ne.s32.totalorder %s58, %s61
      %p67 = scmp.eq.s32.totalorder %s22, 0
      %p68 = por %p66, %p67
      %p69 = scmp.ne.s32.totalorder %s58, %s61
      %p70 = scmp.eq.s32.totalorder %s27, 3
      %p71 = por %p69, %p70
      %p72 = scmp.ne.s32.totalorder %s61, %s62
      %p73 = scmp.eq.s32.totalorder %s27, 0
      %p74 = por %p72, %p73
      %p75 = scmp.ne.s32.totalorder %s61, %s62
      %p76 = scmp.eq.s32.totalorder %s28, 3
      %p77 = por %p75, %p76
      %p79 = scmp.ne.s32.totalorder %s62, %s78
      %p80 = scmp.eq.s32.totalorder %s28, 0
      %p81 = por %p79, %p80
      %s82 = ssub.s32 %s22, %s29
      %p83 = scmp.eq.s32.totalorder %s82, 0
      %s85 = sadd.s32 %s84, 1
      %s86 = scalar_select %p83, %s84, %s85
      %p89 = pneg %p83
      %p90 = scmp.eq.s32.totalorder %s22, 3
      %p91 = por %p89, %p90
      %p92 = scmp.ne.s32.totalorder %s84, %s87
      %p93 = scmp.eq.s32.totalorder %s22, 0
      %p94 = por %p92, %p93
      %p95 = scmp.ne.s32.totalorder %s84, %s87
      %p96 = scmp.eq.s32.totalorder %s27, 3
      %p97 = por %p95, %p96
      %p98 = scmp.ne.s32.totalorder %s87, %s88
      %p99 = scmp.eq.s32.totalorder %s27, 0
      %p100 = por %p98, %p99
      %p101 = scmp.ne.s32.totalorder %s87, %s88
      %p102 = scmp.eq.s32.totalorder %s28, 3
      %p103 = por %p101, %p102
      %p105 = scmp.ne.s32.totalorder %s88, %s104
      %p106 = scmp.eq.s32.totalorder %s28, 0
      %p107 = por %p105, %p106
      %s108 = ssub.s32 %s22, %s29
      %p109 = scmp.eq.s32.totalorder %s108, 0
      %s111 = sadd.s32 %s110, 1
      %s112 = scalar_select %p109, %s110, %s111
      %p115 = pneg %p109
      %p116 = scmp.eq.s32.totalorder %s22, 3
      %p117 = por %p115, %p116
      %p118 = scmp.ne.s32.totalorder %s110, %s113
      %p119 = scmp.eq.s32.totalorder %s22, 0
      %p120 = por %p118, %p119
      %p121 = scmp.ne.s32.totalorder %s110, %s113
      %p122 = scmp.eq.s32.totalorder %s27, 3
      %p123 = por %p121, %p122
      %p124 = scmp.ne.s32.totalorder %s113, %s114
      %p125 = scmp.eq.s32.totalorder %s27, 0
      %p126 = por %p124, %p125
      %p127 = scmp.ne.s32.totalorder %s113, %s114
      %p128 = scmp.eq.s32.totalorder %s28, 3
      %p129 = por %p127, %p128
      %p131 = scmp.ne.s32.totalorder %s114, %s130
      %p132 = scmp.eq.s32.totalorder %s28, 0
      %p133 = por %p131, %p132
      %s135 = sadd.s32 %s134, 1
      %p138 = scmp.eq.s32.totalorder %s22, 3
      %p139 = scmp.ne.s32.totalorder %s134, %s136
      %p140 = scmp.eq.s32.totalorder %s22, 0
      %p141 = por %p139, %p140
      %p142 = scmp.ne.s32.totalorder %s134, %s136
      %p143 = scmp.eq.s32.totalorder %s27, 3
      %p144 = por %p142, %p143
      %p145 = scmp.ne.s32.totalorder %s136, %s137
      %p146 = scmp.eq.s32.totalorder %s27, 0
      %p147 = por %p145, %p146
      %p148 = scmp.ne.s32.totalorder %s136, %s137
      %p149 = scmp.eq.s32.totalorder %s28, 3
      %p150 = por %p148, %p149
      %p152 = scmp.ne.s32.totalorder %s137, %s151
      %p153 = scmp.eq.s32.totalorder %s28, 0
      %p154 = por %p152, %p153
      %s156 = sadd.s32 %s155, 1
      %p159 = scmp.eq.s32.totalorder %s22, 3
      %p160 = scmp.ne.s32.totalorder %s155, %s157
      %p161 = scmp.eq.s32.totalorder %s22, 0
      %p162 = por %p160, %p161
      %p163 = scmp.ne.s32.totalorder %s155, %s157
      %p164 = scmp.eq.s32.totalorder %s27, 3
      %p165 = por %p163, %p164
      %p166 = scmp.ne.s32.totalorder %s157, %s158
      %p167 = scmp.eq.s32.totalorder %s27, 0
      %p168 = por %p166, %p167
      %p169 = scmp.ne.s32.totalorder %s157, %s158
      %p170 = scmp.eq.s32.totalorder %s28, 3
      %p171 = por %p169, %p170
      %p173 = scmp.ne.s32.totalorder %s158, %s172
      %p174 = scmp.eq.s32.totalorder %s28, 0
      %p175 = por %p173, %p174
      %s177 = sadd.s32 %s176, 1
      %p180 = scmp.eq.s32.totalorder %s22, 3
      %p181 = scmp.ne.s32.totalorder %s176, %s178
      %p182 = scmp.eq.s32.totalorder %s22, 0
      %p183 = por %p181, %p182
      %p184 = scmp.ne.s32.totalorder %s176, %s178
      %p185 = scmp.eq.s32.totalorder %s27, 3
      %p186 = por %p184, %p185
      %p187 = scmp.ne.s32.totalorder %s178, %s179
      %p188 = scmp.eq.s32.totalorder %s27, 0
      %p189 = por %p187, %p188
      %p190 = scmp.ne.s32.totalorder %s178, %s179
      %p191 = scmp.eq.s32.totalorder %s28, 3
      %p192 = por %p190, %p191
      %p194 = scmp.ne.s32.totalorder %s179, %s193
      %p195 = scmp.eq.s32.totalorder %s28, 0
      %p196 = por %p194, %p195
      %s198 = sadd.s32 %s197, 1
      %p201 = scmp.eq.s32.totalorder %s22, 3
      %p202 = scmp.ne.s32.totalorder %s197, %s199
      %p203 = scmp.eq.s32.totalorder %s22, 0
      %p204 = por %p202, %p203
      %p205 = scmp.ne.s32.totalorder %s197, %s199
      %p206 = scmp.eq.s32.totalorder %s27, 3
      %p207 = por %p205, %p206
      %p208 = scmp.ne.s32.totalorder %s199, %s200
      %p209 = scmp.eq.s32.totalorder %s27, 0
      %p210 = por %p208, %p209
      %p211 = scmp.ne.s32.totalorder %s199, %s200
      %p212 = scmp.eq.s32.totalorder %s28, 3
      %p213 = por %p211, %p212
      %p215 = scmp.ne.s32.totalorder %s200, %s214
      %p216 = scmp.eq.s32.totalorder %s28, 0
      %p217 = por %p215, %p216
      %s219 = sadd.s32 %s218, 1
      %p222 = scmp.eq.s32.totalorder %s22, 3
      %p223 = scmp.ne.s32.totalorder %s218, %s220
      %p224 = scmp.eq.s32.totalorder %s22, 0
      %p225 = por %p223, %p224
      %p226 = scmp.ne.s32.totalorder %s218, %s220
      %p227 = scmp.eq.s32.totalorder %s27, 3
      %p228 = por %p226, %p227
      %p229 = scmp.ne.s32.totalorder %s220, %s221
      %p230 = scmp.eq.s32.totalorder %s27, 0
      %p231 = por %p229, %p230
      %p232 = scmp.ne.s32.totalorder %s220, %s221
      %p233 = scmp.eq.s32.totalorder %s28, 3
      %p234 = por %p232, %p233
      %p236 = scmp.ne.s32.totalorder %s221, %s235
      %p237 = scmp.eq.s32.totalorder %s28, 0
      %p238 = por %p236, %p237
      %s240 = sadd.s32 %s239, 1
      %p243 = scmp.eq.s32.totalorder %s22, 3
      %p244 = scmp.ne.s32.totalorder %s239, %s241
      %p245 = scmp.eq.s32.totalorder %s22, 0
      %p246 = por %p244, %p245
      %p247 = scmp.ne.s32.totalorder %s239, %s241
      %p248 = scmp.eq.s32.totalorder %s27, 3
      %p249 = por %p247, %p248
      %p250 = scmp.ne.s32.totalorder %s241, %s242
      %p251 = scmp.eq.s32.totalorder %s27, 0
      %p252 = por %p250, %p251
      %p253 = scmp.ne.s32.totalorder %s241, %s242
      %p254 = scmp.eq.s32.totalorder %s28, 3
      %p255 = por %p253, %p254
      %p257 = scmp.ne.s32.totalorder %s242, %s256
      %p258 = scmp.eq.s32.totalorder %s28, 0
      %p259 = por %p257, %p258
      %s261 = sadd.s32 %s260, 1
      %p264 = scmp.eq.s32.totalorder %s22, 3
      %p265 = scmp.ne.s32.totalorder %s260, %s262
      %p266 = scmp.eq.s32.totalorder %s22, 0
      %p267 = por %p265, %p266
      %p268 = scmp.ne.s32.totalorder %s260, %s262
      %p269 = scmp.eq.s32.totalorder %s27, 3
      %p270 = por %p268, %p269
      %p271 = scmp.ne.s32.totalorder %s262, %s263
      %p272 = scmp.eq.s32.totalorder %s27, 0
      %p273 = por %p271, %p272
      %p274 = scmp.ne.s32.totalorder %s262, %s263
      %p275 = scmp.eq.s32.totalorder %s28, 3
      %p276 = por %p274, %p275
      %p278 = scmp.ne.s32.totalorder %s263, %s277
      %p279 = scmp.eq.s32.totalorder %s28, 0
      %p280 = por %p278, %p279
      %s281 = ssub.s32 %s22, %s29
      %p282 = scmp.eq.s32.totalorder %s281, 0
      %s284 = sadd.s32 %s283, 1
      %s285 = scalar_select %p282, %s283, %s284
      %p288 = pneg %p282
      %p289 = scmp.eq.s32.totalorder %s22, 3
      %p290 = por %p288, %p289
      %p291 = scmp.ne.s32.totalorder %s283, %s286
      %p292 = scmp.eq.s32.totalorder %s22, 0
      %p293 = por %p291, %p292
      %p294 = scmp.ne.s32.totalorder %s283, %s286
      %p295 = scmp.eq.s32.totalorder %s27, 3
      %p296 = por %p294, %p295
      %p297 = scmp.ne.s32.totalorder %s286, %s287
      %p298 = scmp.eq.s32.totalorder %s27, 0
      %p299 = por %p297, %p298
      %p300 = scmp.ne.s32.totalorder %s286, %s287
      %p301 = scmp.eq.s32.totalorder %s28, 3
      %p302 = por %p300, %p301
      %p304 = scmp.ne.s32.totalorder %s287, %s303
      %p305 = scmp.eq.s32.totalorder %s28, 0
      %p306 = por %p304, %p305
      %s307 = ssub.s32 %s22, %s29
      %p308 = scmp.eq.s32.totalorder %s307, 0
      %s310 = sadd.s32 %s309, 1
      %s311 = scalar_select %p308, %s309, %s310
      %p314 = pneg %p308
      %p315 = scmp.eq.s32.totalorder %s22, 3
      %p316 = por %p314, %p315
      %p317 = scmp.ne.s32.totalorder %s309, %s312
      %p318 = scmp.eq.s32.totalorder %s22, 0
      %p319 = por %p317, %p318
      %p320 = scmp.ne.s32.totalorder %s309, %s312
      %p321 = scmp.eq.s32.totalorder %s27, 3
      %p322 = por %p320, %p321
      %p323 = scmp.ne.s32.totalorder %s312, %s313
      %p324 = scmp.eq.s32.totalorder %s27, 0
      %p325 = por %p323, %p324
      %p326 = scmp.ne.s32.totalorder %s312, %s313
      %p327 = scmp.eq.s32.totalorder %s28, 3
      %p328 = por %p326, %p327
      %p330 = scmp.ne.s32.totalorder %s313, %s329
      %p331 = scmp.eq.s32.totalorder %s28, 0
      %p332 = por %p330, %p331
      %p333 = scmp.le.s32.totalorder 1, %s22
      %p334 = scmp.lt.s32.totalorder %s22, 5
      %p335 = pnand %p333, %p334
      %p336 = pneg %p335
      // Predicated region
      $region9: #{transformer_var_forward.1} parent=5 // pred_check
        _
      $region10: #{transformer_var_forward.1} parent=5 // pred_check_branch
        %338 = sbr.rel (%p335) target = $region12
      $region11: #{transformer_var_forward.1} parent=5 // pred_region
        %s339 = ssub.s32 %s22, 1
        // Predicated region
        $region13: #{transformer_var_forward.1} parent=11 // pred_check
          %p340 = pneg %p147
        $region14: #{transformer_var_forward.1} parent=11 // pred_check_branch
          %342 = sbr.rel (%p340) target = $region16
        $region15: #{transformer_var_forward.1} parent=11 // pred_region
          _
        $region16: #{transformer_var_forward.1} parent=11 // pred_fallthru
          _
        // Predicated region
        $region17: #{transformer_var_forward.1} parent=11 // pred_check
          %p343 = pneg %p168
        $region18: #{transformer_var_forward.1} parent=11 // pred_check_branch
          %345 = sbr.rel (%p343) target = $region20
        $region19: #{transformer_var_forward.1} parent=11 // pred_region
          _
        $region20: #{transformer_var_forward.1} parent=11 // pred_fallthru
          _
        // Predicated region
        $region21: #{transformer_var_forward.1} parent=11 // pred_check
          %p346 = pneg %p189
        $region22: #{transformer_var_forward.1} parent=11 // pred_check_branch
          %348 = sbr.rel (%p346) target = $region24
        $region23: #{transformer_var_forward.1} parent=11 // pred_region
          _
        $region24: #{transformer_var_forward.1} parent=11 // pred_fallthru
          _
        // Predicated region
        $region25: #{transformer_var_forward.1} parent=11 // pred_check
          %p349 = pneg %p210
        $region26: #{transformer_var_forward.1} parent=11 // pred_check_branch
          %351 = sbr.rel (%p349) target = $region28
        $region27: #{transformer_var_forward.1} parent=11 // pred_region
          _
        $region28: #{transformer_var_forward.1} parent=11 // pred_fallthru
          _
        // Predicated region
        $region29: #{transformer_var_forward.1} parent=11 // pred_check
          %p352 = pneg %p231
        $region30: #{transformer_var_forward.1} parent=11 // pred_check_branch
          %354 = sbr.rel (%p352) target = $region32
        $region31: #{transformer_var_forward.1} parent=11 // pred_region
          _
        $region32: #{transformer_var_forward.1} parent=11 // pred_fallthru
          _
        // Predicated region
        $region33: #{transformer_var_forward.1} parent=11 // pred_check
          %p355 = pneg %p252
        $region34: #{transformer_var_forward.1} parent=11 // pred_check_branch
          %357 = sbr.rel (%p355) target = $region36
        $region35: #{transformer_var_forward.1} parent=11 // pred_region
          _
        $region36: #{transformer_var_forward.1} parent=11 // pred_fallthru
          _
        // Predicated region
        $region37: #{transformer_var_forward.1} parent=11 // pred_check
          %p358 = pneg %p273
        $region38: #{transformer_var_forward.1} parent=11 // pred_check_branch
          %360 = sbr.rel (%p358) target = $region40
        $region39: #{transformer_var_forward.1} parent=11 // pred_region
          _
        $region40: #{transformer_var_forward.1} parent=11 // pred_fallthru
          _
      $region12: #{transformer_var_forward.1} parent=5 // pred_fallthru
        _
      %p361 = scmp.lt.s32.totalorder %s22, 4
      // Predicated region
      $region41: #{transformer_var_forward.1} parent=5 // pred_check
        %p362 = pneg %p361
      $region42: #{transformer_var_forward.1} parent=5 // pred_check_branch
        %364 = sbr.rel (%p362) target = $region44
      $region43: #{transformer_var_forward.1} parent=5 // pred_region
        // Predicated region
        $region45: #{transformer_var_forward.1} parent=43 // pred_check
          %p365 = pneg %p42
        $region46: #{transformer_var_forward.1} parent=43 // pred_check_branch
          %367 = sbr.rel (%p365) target = $region48
        $region47: #{transformer_var_forward.1} parent=43 // pred_region
          %s368 = smul.u32 16, %s22
          %p369 = scmp.lt.s32.totalorder %s368, 63
          %s370 = scalar_select %p369, %s368, 63
          %s371 = smul.addr %s370, 2
          %s372 = smul.addr %s371, 4
          %s373 = scalar_lea.vmem %s0, %s372
          %s374 = smul.u32 16, %s22
        $region48: #{transformer_var_forward.1} parent=43 // pred_fallthru
          _
        // Predicated region
        $region49: #{transformer_var_forward.1} parent=43 // pred_check
          %p375 = pneg %p68
        $region50: #{transformer_var_forward.1} parent=43 // pred_check_branch
          %377 = sbr.rel (%p375) target = $region52
        $region51: #{transformer_var_forward.1} parent=43 // pred_region
          %s378 = smul.u32 16, %s22
          %p379 = scmp.lt.s32.totalorder %s378, 63
          %s380 = scalar_select %p379, %s378, 63
          %s381 = smul.addr %s380, 2
          %s382 = smul.addr %s381, 8
          %s383 = scalar_lea.vmem %s1, %s382
          %s384 = smul.u32 16, %s22
        $region52: #{transformer_var_forward.1} parent=43 // pred_fallthru
          _
        // Predicated region
        $region53: #{transformer_var_forward.1} parent=43 // pred_check
          %p385 = pneg %p94
        $region54: #{transformer_var_forward.1} parent=43 // pred_check_branch
          %387 = sbr.rel (%p385) target = $region56
        $region55: #{transformer_var_forward.1} parent=43 // pred_region
          %s388 = smul.u32 16, %s22
          %p389 = scmp.lt.s32.totalorder %s388, 63
          %s390 = scalar_select %p389, %s388, 63
          %s391 = smul.addr %s390, 2
          %s392 = smul.addr %s391, 4
          %s393 = scalar_lea.vmem %s2, %s392
          %s394 = smul.u32 16, %s22
        $region56: #{transformer_var_forward.1} parent=43 // pred_fallthru
          _
        // Predicated region
        $region57: #{transformer_var_forward.1} parent=43 // pred_check
          %p395 = pneg %p120
        $region58: #{transformer_var_forward.1} parent=43 // pred_check_branch
          %397 = sbr.rel (%p395) target = $region60
        $region59: #{transformer_var_forward.1} parent=43 // pred_region
          %s398 = smul.u32 16, %s22
          %p399 = scmp.lt.s32.totalorder %s398, 63
          %s400 = scalar_select %p399, %s398, 63
          %s401 = smul.addr %s400, 2
          %s402 = smul.addr %s401, 4
          %s403 = scalar_lea.vmem %s3, %s402
          %s404 = smul.u32 16, %s22
        $region60: #{transformer_var_forward.1} parent=43 // pred_fallthru
          _
      $region44: #{transformer_var_forward.1} parent=5 // pred_fallthru
        _
      %p405 = scmp.le.s32.totalorder 1, %s22
      %p406 = scmp.lt.s32.totalorder %s22, 5
      %p407 = pnand %p405, %p406
      %p408 = pneg %p407
      // Predicated region
      $region61: #{transformer_var_forward.1} parent=5 // pred_check
        _
      $region62: #{transformer_var_forward.1} parent=5 // pred_check_branch
        %410 = sbr.rel (%p407) target = $region64
      $region63: #{transformer_var_forward.1} parent=5 // pred_region
        %s411 = ssub.s32 %s22, 1
        %s412 = smul.u32 16, %s27
        %p413 = scmp.lt.s32.totalorder %s412, 63
        %s414 = scalar_select %p413, %s412, 63
        %s415 = smul.addr %s414, 2
        %s416 = smul.addr %s415, 4
        %s417 = scalar_lea.vmem %s0, %s416
        %p418 = pneg %p48
        %p419 = pneg %p45
        %s420 = smul.u32 16, %s27
        %p421 = scmp.lt.s32.totalorder %s420, 63
        %s422 = scalar_select %p421, %s420, 63
        %s423 = smul.addr %s422, 2
        %s424 = smul.addr %s423, 8
        %s425 = scalar_lea.vmem %s1, %s424
        %p426 = pneg %p74
        %p427 = pneg %p71
        %s428 = smul.u32 16, %s27
        %p429 = scmp.lt.s32.totalorder %s428, 63
        %s430 = scalar_select %p429, %s428, 63
        %s431 = smul.addr %s430, 2
        %s432 = smul.addr %s431, 4
        %s433 = scalar_lea.vmem %s2, %s432
        %p434 = pneg %p100
        %p435 = pneg %p97
        %s436 = smul.u32 16, %s27
        %p437 = scmp.lt.s32.totalorder %s436, 63
        %s438 = scalar_select %p437, %s436, 63
        %s439 = smul.addr %s438, 2
        %s440 = smul.addr %s439, 4
        %s441 = scalar_lea.vmem %s3, %s440
        %p442 = pneg %p126
        %p443 = pneg %p123
        %p444 = pneg %p147
        %p445 = pneg %p144
        %p446 = pneg %p168
        %p447 = pneg %p165
        %p448 = pneg %p189
        %p449 = pneg %p186
        %p450 = pneg %p210
        %p451 = pneg %p207
        %p452 = pneg %p231
        %p453 = pneg %p228
        %p454 = pneg %p252
        %p455 = pneg %p249
        %p456 = pneg %p273
        %p457 = pneg %p270
        %p458 = pneg %p299
        %p459 = pneg %p296
        %s460 = smul.u32 16, %s27
        %p461 = scmp.lt.s32.totalorder %s460, 63
        %s462 = scalar_select %p461, %s460, 63
        %s463 = smul.addr %s462, 8
        %s464 = scalar_lea.vmem %s11, %s463
        %p465 = pneg %p325
        %p466 = pneg %p322
        %s467 = sand.u32 %s312, 1
        %s468 = scalar_lea.sflag [#allocation3], %s467
        %s469 = sand.u32 %s312, 1
        %s470 = smul.addr %s469, 256
        %s471 = scalar_lea.vmem [#allocation2], %s470
        %s472 = smul.u32 16, %s27
        %p473 = scmp.lt.s32.totalorder %s472, 63
        %s474 = scalar_select %p473, %s472, 63
        %s475 = smul.addr %s474, 2
        %s476 = smul.addr %s475, 4
        %s477 = scalar_lea.vmem %s0, %s476
        %s478 = smul.u32 16, %s27
        %s479 = smul.u32 16, %s27
        %p480 = scmp.lt.s32.totalorder %s479, 63
        %s481 = scalar_select %p480, %s479, 63
        %s482 = smul.addr %s481, 2
        %s483 = smul.addr %s482, 8
        %s484 = scalar_lea.vmem %s1, %s483
        %s485 = smul.u32 16, %s27
        %s486 = smul.u32 16, %s27
        %p487 = scmp.lt.s32.totalorder %s486, 63
        %s488 = scalar_select %p487, %s486, 63
        %s489 = smul.addr %s488, 2
        %s490 = smul.addr %s489, 4
        %s491 = scalar_lea.vmem %s2, %s490
        %s492 = smul.u32 16, %s27
        %s493 = smul.u32 16, %s27
        %p494 = scmp.lt.s32.totalorder %s493, 63
        %s495 = scalar_select %p494, %s493, 63
        %s496 = smul.addr %s495, 2
        %s497 = smul.addr %s496, 4
        %s498 = scalar_lea.vmem %s3, %s497
        %s499 = smul.u32 16, %s27
        %s500 = smul.u32 16, %s27
        %p501 = scmp.lt.s32.totalorder %s500, 63
        %s502 = scalar_select %p501, %s500, 63
        %s503 = smul.addr %s502, 8
        %s504 = scalar_lea.vmem %s11, %s503
        %s505 = smul.u32 16, %s27
        %s506 = smul.u32 16, %s27
        %v508 = vld [vmem:[%s477] sm:$0xff]
        %v509 = vld [vmem:[%s477 + $0x8] sm:$0xff]
        %v510 = vld [vmem:[%s477 + $0x10] sm:$0xff]
        %v511 = vld [vmem:[%s477 + $0x18] sm:$0xff]
        %v512 = vld [vmem:[%s477 + $0x20] sm:$0xff]
        %v513 = vld [vmem:[%s477 + $0x28] sm:$0xff]
        %v514 = vld [vmem:[%s477 + $0x30] sm:$0xff]
        %v515 = vld [vmem:[%s477 + $0x38] sm:$0xff]
        %v516 = vld [vmem:[%s477 + $0x40] sm:$0xff]
        %v517 = vld [vmem:[%s477 + $0x48] sm:$0xff]
        %v518 = vld [vmem:[%s477 + $0x50] sm:$0xff]
        %v519 = vld [vmem:[%s477 + $0x58] sm:$0xff]
        %v520 = vld [vmem:[%s477 + $0x60] sm:$0xff]
        %v521 = vld [vmem:[%s477 + $0x68] sm:$0xff]
        %v522 = vld [vmem:[%s477 + $0x70] sm:$0xff]
        %v523 = vld [vmem:[%s477 + $0x78] sm:$0xff]
        %v524 = vld [vmem:[%s4] sm:$0xff]
        %v525 = vld [vmem:[%s4 + $0x8] sm:$0xff]
        %v526 = vld [vmem:[%s4 + $0x10] sm:$0xff]
        %v527 = vld [vmem:[%s4 + $0x18] sm:$0xff]
        %v528 = vld [vmem:[%s4 + $0x20] sm:$0xff]
        %v529 = vld [vmem:[%s4 + $0x28] sm:$0xff]
        %v530 = vld [vmem:[%s4 + $0x30] sm:$0xff]
        %v531 = vld [vmem:[%s4 + $0x38] sm:$0xff]
        %v532 = vld [vmem:[%s4 + $0x40] sm:$0xff]
        %v533 = vld [vmem:[%s4 + $0x48] sm:$0xff]
        %v534 = vld [vmem:[%s4 + $0x50] sm:$0xff]
        %v535 = vld [vmem:[%s4 + $0x58] sm:$0xff]
        %v536 = vld [vmem:[%s4 + $0x60] sm:$0xff]
        %v537 = vld [vmem:[%s4 + $0x68] sm:$0xff]
        %v538 = vld [vmem:[%s4 + $0x70] sm:$0xff]
        %v539 = vld [vmem:[%s4 + $0x78] sm:$0xff]
        %v540 = vld [vmem:[%s4 + $0x80] sm:$0xff]
        %v541 = vld [vmem:[%s4 + $0x88] sm:$0xff]
        %v542 = vld [vmem:[%s4 + $0x90] sm:$0xff]
        %v543 = vld [vmem:[%s4 + $0x98] sm:$0xff]
        %v544 = vld [vmem:[%s4 + $0xa0] sm:$0xff]
        %v545 = vld [vmem:[%s4 + $0xa8] sm:$0xff]
        %v546 = vld [vmem:[%s4 + $0xb0] sm:$0xff]
        %v547 = vld [vmem:[%s4 + $0xb8] sm:$0xff]
        %v548 = vld [vmem:[%s4 + $0xc0] sm:$0xff]
        %v549 = vld [vmem:[%s4 + $0xc8] sm:$0xff]
        %v550 = vld [vmem:[%s4 + $0xd0] sm:$0xff]
        %v551 = vld [vmem:[%s4 + $0xd8] sm:$0xff]
        %v552 = vld [vmem:[%s4 + $0xe0] sm:$0xff]
        %v553 = vld [vmem:[%s4 + $0xe8] sm:$0xff]
        %v554 = vld [vmem:[%s4 + $0xf0] sm:$0xff]
        %v555 = vld [vmem:[%s4 + $0xf8] sm:$0xff]
        %v556 = vld [vmem:[%s5] sm:$0x3]
        %v558 = vlaneseq
        %v559 = vshrl.u32 %v558, 7
        %v560 = vsub.s32 0, %v559
        %v561 = vrot.slane %v556, %v560
        %v562 = vlaneseq
        %v563 = vshrl.u32 %v562, 7
        %v564 = vsub.s32 1, %v563
        %v565 = vrot.slane %v556, %v564
        %v584 = vunpack.c.l.b16 %v508
        %v585 = vunpack.c.h.b16 %v508
        %v586 = vunpack.c.l.b16 %v509
        %v587 = vunpack.c.h.b16 %v509
        %v588 = vunpack.c.l.b16 %v510
        %v589 = vunpack.c.h.b16 %v510
        %v590 = vunpack.c.l.b16 %v511
        %v591 = vunpack.c.h.b16 %v511
        %v592 = vunpack.c.l.b16 %v512
        %v593 = vunpack.c.h.b16 %v512
        %v594 = vunpack.c.l.b16 %v513
        %v595 = vunpack.c.h.b16 %v513
        %v596 = vunpack.c.l.b16 %v514
        %v597 = vunpack.c.h.b16 %v514
        %v598 = vunpack.c.l.b16 %v515
        %v599 = vunpack.c.h.b16 %v515
        %v600 = vunpack.c.l.b16 %v516
        %v601 = vunpack.c.h.b16 %v516
        %v602 = vunpack.c.l.b16 %v517
        %v603 = vunpack.c.h.b16 %v517
        %v604 = vunpack.c.l.b16 %v518
        %v605 = vunpack.c.h.b16 %v518
        %v606 = vunpack.c.l.b16 %v519
        %v607 = vunpack.c.h.b16 %v519
        %v608 = vunpack.c.l.b16 %v520
        %v609 = vunpack.c.h.b16 %v520
        %v610 = vunpack.c.l.b16 %v521
        %v611 = vunpack.c.h.b16 %v521
        %v612 = vunpack.c.l.b16 %v522
        %v613 = vunpack.c.h.b16 %v522
        %v614 = vunpack.c.l.b16 %v523
        %v615 = vunpack.c.h.b16 %v523
        %v616 = vpack.c.b16 %v586, %v584
        %v617 = vpack.c.b16 %v587, %v585
        %v618 = vpack.c.b16 %v590, %v588
        %v619 = vpack.c.b16 %v591, %v589
        %v620 = vpack.c.b16 %v594, %v592
        %v621 = vpack.c.b16 %v595, %v593
        %v622 = vpack.c.b16 %v598, %v596
        %v623 = vpack.c.b16 %v599, %v597
        %v624 = vpack.c.b16 %v602, %v600
        %v625 = vpack.c.b16 %v603, %v601
        %v626 = vpack.c.b16 %v606, %v604
        %v627 = vpack.c.b16 %v607, %v605
        %v628 = vpack.c.b16 %v610, %v608
        %v629 = vpack.c.b16 %v611, %v609
        %v630 = vpack.c.b16 %v614, %v612
        %v631 = vpack.c.b16 %v615, %v613
        %v680 = vunpack.c.l.b16 %v524
        %v681 = vunpack.c.h.b16 %v524
        %v682 = vunpack.c.l.b16 %v525
        %v683 = vunpack.c.h.b16 %v525
        %v684 = vunpack.c.l.b16 %v526
        %v685 = vunpack.c.h.b16 %v526
        %v686 = vunpack.c.l.b16 %v527
        %v687 = vunpack.c.h.b16 %v527
        %v688 = vunpack.c.l.b16 %v528
        %v689 = vunpack.c.h.b16 %v528
        %v690 = vunpack.c.l.b16 %v529
        %v691 = vunpack.c.h.b16 %v529
        %v692 = vunpack.c.l.b16 %v530
        %v693 = vunpack.c.h.b16 %v530
        %v694 = vunpack.c.l.b16 %v531
        %v695 = vunpack.c.h.b16 %v531
        %v696 = vunpack.c.l.b16 %v532
        %v697 = vunpack.c.h.b16 %v532
        %v698 = vunpack.c.l.b16 %v533
        %v699 = vunpack.c.h.b16 %v533
        %v700 = vunpack.c.l.b16 %v534
        %v701 = vunpack.c.h.b16 %v534
        %v702 = vunpack.c.l.b16 %v535
        %v703 = vunpack.c.h.b16 %v535
        %v704 = vunpack.c.l.b16 %v536
        %v705 = vunpack.c.h.b16 %v536
        %v706 = vunpack.c.l.b16 %v537
        %v707 = vunpack.c.h.b16 %v537
        %v708 = vunpack.c.l.b16 %v538
        %v709 = vunpack.c.h.b16 %v538
        %v710 = vunpack.c.l.b16 %v539
        %v711 = vunpack.c.h.b16 %v539
        %v712 = vunpack.c.l.b16 %v540
        %v713 = vunpack.c.h.b16 %v540
        %v714 = vunpack.c.l.b16 %v541
        %v715 = vunpack.c.h.b16 %v541
        %v716 = vunpack.c.l.b16 %v542
        %v717 = vunpack.c.h.b16 %v542
        %v718 = vunpack.c.l.b16 %v543
        %v719 = vunpack.c.h.b16 %v543
        %v720 = vunpack.c.l.b16 %v544
        %v721 = vunpack.c.h.b16 %v544
        %v722 = vunpack.c.l.b16 %v545
        %v723 = vunpack.c.h.b16 %v545
        %v724 = vunpack.c.l.b16 %v546
        %v725 = vunpack.c.h.b16 %v546
        %v726 = vunpack.c.l.b16 %v547
        %v727 = vunpack.c.h.b16 %v547
        %v728 = vunpack.c.l.b16 %v548
        %v729 = vunpack.c.h.b16 %v548
        %v730 = vunpack.c.l.b16 %v549
        %v731 = vunpack.c.h.b16 %v549
        %v732 = vunpack.c.l.b16 %v550
        %v733 = vunpack.c.h.b16 %v550
        %v734 = vunpack.c.l.b16 %v551
        %v735 = vunpack.c.h.b16 %v551
        %v736 = vunpack.c.l.b16 %v552
        %v737 = vunpack.c.h.b16 %v552
        %v738 = vunpack.c.l.b16 %v553
        %v739 = vunpack.c.h.b16 %v553
        %v740 = vunpack.c.l.b16 %v554
        %v741 = vunpack.c.h.b16 %v554
        %v742 = vunpack.c.l.b16 %v555
        %v743 = vunpack.c.h.b16 %v555
        %v744 = vpack.c.b16 %v682, %v680
        %v745 = vpack.c.b16 %v683, %v681
        %v746 = vpack.c.b16 %v686, %v684
        %v747 = vpack.c.b16 %v687, %v685
        %v748 = vpack.c.b16 %v690, %v688
        %v749 = vpack.c.b16 %v691, %v689
        %v750 = vpack.c.b16 %v694, %v692
        %v751 = vpack.c.b16 %v695, %v693
        %v752 = vpack.c.b16 %v698, %v696
        %v753 = vpack.c.b16 %v699, %v697
        %v754 = vpack.c.b16 %v702, %v700
        %v755 = vpack.c.b16 %v703, %v701
        %v756 = vpack.c.b16 %v706, %v704
        %v757 = vpack.c.b16 %v707, %v705
        %v758 = vpack.c.b16 %v710, %v708
        %v759 = vpack.c.b16 %v711, %v709
        %v760 = vpack.c.b16 %v714, %v712
        %v761 = vpack.c.b16 %v715, %v713
        %v762 = vpack.c.b16 %v718, %v716
        %v763 = vpack.c.b16 %v719, %v717
        %v764 = vpack.c.b16 %v722, %v720
        %v765 = vpack.c.b16 %v723, %v721
        %v766 = vpack.c.b16 %v726, %v724
        %v767 = vpack.c.b16 %v727, %v725
        %v768 = vpack.c.b16 %v730, %v728
        %v769 = vpack.c.b16 %v731, %v729
        %v770 = vpack.c.b16 %v734, %v732
        %v771 = vpack.c.b16 %v735, %v733
        %v772 = vpack.c.b16 %v738, %v736
        %v773 = vpack.c.b16 %v739, %v737
        %v774 = vpack.c.b16 %v742, %v740
        %v775 = vpack.c.b16 %v743, %v741
        %808 = vmatprep.subr.bf16.mxu0 %v759
        %809 = vmatpush1.bf16.msra.mxu0 %v758
        %810 = vmatprep.subr.bf16.mxu0 %v757
        %811 = vmatpush1.bf16.msra.mxu0 %v756
        %812 = vmatprep.subr.bf16.mxu0 %v755
        %813 = vmatpush1.bf16.msra.mxu0 %v754
        %814 = vmatprep.subr.bf16.mxu0 %v753
        %815 = vmatpush1.bf16.msra.mxu0 %v752
        %816 = vmatprep.subr.bf16.mxu0 %v751
        %817 = vmatpush1.bf16.msra.mxu0 %v750
        %818 = vmatprep.subr.bf16.mxu0 %v749
        %819 = vmatpush1.bf16.msra.mxu0 %v748
        %820 = vmatprep.subr.bf16.mxu0 %v747
        %821 = vmatpush1.bf16.msra.mxu0 %v746
        %822 = vmatprep.subr.bf16.mxu0 %v745
        %823 = vmatpush1.bf16.msra.mxu0 %v744
        %824 = vmatprep.subr.bf16.mxu0 %v775
        %825 = vmatpush2.bf16.msra.mxu0 %v774
        %826 = vmatprep.subr.bf16.mxu0 %v773
        %827 = vmatpush2.bf16.msra.mxu0 %v772
        %828 = vmatprep.subr.bf16.mxu0 %v771
        %829 = vmatpush2.bf16.msra.mxu0 %v770
        %830 = vmatprep.subr.bf16.mxu0 %v769
        %831 = vmatpush2.bf16.msra.mxu0 %v768
        %832 = vmatprep.subr.bf16.mxu0 %v767
        %833 = vmatpush2.bf16.msra.mxu0 %v766
        %834 = vmatprep.subr.bf16.mxu0 %v765
        %835 = vmatpush2.bf16.msra.mxu0 %v764
        %836 = vmatprep.subr.bf16.mxu0 %v763
        %837 = vmatpush2.bf16.msra.mxu0 %v762
        %838 = vmatprep.subr.bf16.mxu0 %v761
        %839 = vmatpush2.bf16.msra.mxu0 %v760
        %840 = vmatprep.mubr.bf16.mxu0 %v617
        %841 = vmatmul.mubr.bf16.gmra.mxu0 %v616
        %v842 = vpop.f32.mrf.mxu0
        %v843 = vadd.f32 %v561, %v842
        %v844 = vpop.f32.mrf.mxu0
        %v845 = vadd.f32 %v565, %v844
        %v846 = vpop.f32.mrf.mxu0
        %v847 = vadd.f32 %v561, %v846
        %v848 = vpop.f32.mrf.mxu0
        %v849 = vadd.f32 %v565, %v848
        %850 = vmatprep.mubr.bf16.mxu0 %v619
        %851 = vmatmul.mubr.bf16.gmra.mxu0 %v618
        %v852 = vpop.f32.mrf.mxu0
        %v853 = vadd.f32 %v561, %v852
        %v854 = vpop.f32.mrf.mxu0
        %v855 = vadd.f32 %v565, %v854
        %v856 = vpop.f32.mrf.mxu0
        %v857 = vadd.f32 %v561, %v856
        %v858 = vpop.f32.mrf.mxu0
        %v859 = vadd.f32 %v565, %v858
        %860 = vmatprep.mubr.bf16.mxu0 %v621
        %861 = vmatmul.mubr.bf16.gmra.mxu0 %v620
        %v862 = vpop.f32.mrf.mxu0
        %v863 = vadd.f32 %v561, %v862
        %v864 = vpop.f32.mrf.mxu0
        %v865 = vadd.f32 %v565, %v864
        %v866 = vpop.f32.mrf.mxu0
        %v867 = vadd.f32 %v561, %v866
        %v868 = vpop.f32.mrf.mxu0
        %v869 = vadd.f32 %v565, %v868
        %870 = vmatprep.mubr.bf16.mxu0 %v623
        %871 = vmatmul.mubr.bf16.gmra.mxu0 %v622
        %v872 = vpop.f32.mrf.mxu0
        %v873 = vadd.f32 %v561, %v872
        %v874 = vpop.f32.mrf.mxu0
        %v875 = vadd.f32 %v565, %v874
        %v876 = vpop.f32.mrf.mxu0
        %v877 = vadd.f32 %v561, %v876
        %v878 = vpop.f32.mrf.mxu0
        %v879 = vadd.f32 %v565, %v878
        %880 = vmatprep.mubr.bf16.mxu0 %v625
        %881 = vmatmul.mubr.bf16.gmra.mxu0 %v624
        %v882 = vpop.f32.mrf.mxu0
        %v883 = vadd.f32 %v561, %v882
        %v884 = vpop.f32.mrf.mxu0
        %v885 = vadd.f32 %v565, %v884
        %v886 = vpop.f32.mrf.mxu0
        %v887 = vadd.f32 %v561, %v886
        %v888 = vpop.f32.mrf.mxu0
        %v889 = vadd.f32 %v565, %v888
        %890 = vmatprep.mubr.bf16.mxu0 %v627
        %891 = vmatmul.mubr.bf16.gmra.mxu0 %v626
        %v892 = vpop.f32.mrf.mxu0
        %v893 = vadd.f32 %v561, %v892
        %v894 = vpop.f32.mrf.mxu0
        %v895 = vadd.f32 %v565, %v894
        %v896 = vpop.f32.mrf.mxu0
        %v897 = vadd.f32 %v561, %v896
        %v898 = vpop.f32.mrf.mxu0
        %v899 = vadd.f32 %v565, %v898
        %900 = vmatprep.mubr.bf16.mxu0 %v629
        %901 = vmatmul.mubr.bf16.gmra.mxu0 %v628
        %v902 = vpop.f32.mrf.mxu0
        %v903 = vadd.f32 %v561, %v902
        %v904 = vpop.f32.mrf.mxu0
        %v905 = vadd.f32 %v565, %v904
        %v906 = vpop.f32.mrf.mxu0
        %v907 = vadd.f32 %v561, %v906
        %v908 = vpop.f32.mrf.mxu0
        %v909 = vadd.f32 %v565, %v908
        %910 = vmatprep.mubr.bf16.mxu0 %v631
        %911 = vmatmul.mubr.bf16.gmra.mxu0 %v630
        %v912 = vpop.f32.mrf.mxu0
        %v913 = vadd.f32 %v561, %v912
        %v914 = vpop.f32.mrf.mxu0
        %v915 = vadd.f32 %v565, %v914
        %v916 = vpop.f32.mrf.mxu0
        %v917 = vadd.f32 %v561, %v916
        %v918 = vpop.f32.mrf.mxu0
        %v919 = vadd.f32 %v565, %v918
        %920 = vdwg.mxu0
        %v921 = vld [vmem:[%s484] sm:$0xff]
        %v922 = vld [vmem:[%s484 + $0x8] sm:$0xff]
        %v923 = vld [vmem:[%s484 + $0x10] sm:$0xff]
        %v924 = vld [vmem:[%s484 + $0x18] sm:$0xff]
        %v925 = vld [vmem:[%s484 + $0x20] sm:$0xff]
        %v926 = vld [vmem:[%s484 + $0x28] sm:$0xff]
        %v927 = vld [vmem:[%s484 + $0x30] sm:$0xff]
        %v928 = vld [vmem:[%s484 + $0x38] sm:$0xff]
        %v929 = vld [vmem:[%s484 + $0x40] sm:$0xff]
        %v930 = vld [vmem:[%s484 + $0x48] sm:$0xff]
        %v931 = vld [vmem:[%s484 + $0x50] sm:$0xff]
        %v932 = vld [vmem:[%s484 + $0x58] sm:$0xff]
        %v933 = vld [vmem:[%s484 + $0x60] sm:$0xff]
        %v934 = vld [vmem:[%s484 + $0x68] sm:$0xff]
        %v935 = vld [vmem:[%s484 + $0x70] sm:$0xff]
        %v936 = vld [vmem:[%s484 + $0x78] sm:$0xff]
        %v937 = vld [vmem:[%s484 + $0x80] sm:$0xff]
        %v938 = vld [vmem:[%s484 + $0x88] sm:$0xff]
        %v939 = vld [vmem:[%s484 + $0x90] sm:$0xff]
        %v940 = vld [vmem:[%s484 + $0x98] sm:$0xff]
        %v941 = vld [vmem:[%s484 + $0xa0] sm:$0xff]
        %v942 = vld [vmem:[%s484 + $0xa8] sm:$0xff]
        %v943 = vld [vmem:[%s484 + $0xb0] sm:$0xff]
        %v944 = vld [vmem:[%s484 + $0xb8] sm:$0xff]
        %v945 = vld [vmem:[%s484 + $0xc0] sm:$0xff]
        %v946 = vld [vmem:[%s484 + $0xc8] sm:$0xff]
        %v947 = vld [vmem:[%s484 + $0xd0] sm:$0xff]
        %v948 = vld [vmem:[%s484 + $0xd8] sm:$0xff]
        %v949 = vld [vmem:[%s484 + $0xe0] sm:$0xff]
        %v950 = vld [vmem:[%s484 + $0xe8] sm:$0xff]
        %v951 = vld [vmem:[%s484 + $0xf0] sm:$0xff]
        %v952 = vld [vmem:[%s484 + $0xf8] sm:$0xff]
        %v953 = vmul.f32 %v921, %v921
        %v954 = vmul.f32 %v922, %v922
        %v955 = vmul.f32 %v923, %v923
        %v956 = vmul.f32 %v924, %v924
        %v957 = vmul.f32 %v925, %v925
        %v958 = vmul.f32 %v926, %v926
        %v959 = vmul.f32 %v927, %v927
        %v960 = vmul.f32 %v928, %v928
        %v961 = vmul.f32 %v929, %v929
        %v962 = vmul.f32 %v930, %v930
        %v963 = vmul.f32 %v931, %v931
        %v964 = vmul.f32 %v932, %v932
        %v965 = vmul.f32 %v933, %v933
        %v966 = vmul.f32 %v934, %v934
        %v967 = vmul.f32 %v935, %v935
        %v968 = vmul.f32 %v936, %v936
        %v969 = vmul.f32 %v937, %v937
        %v970 = vmul.f32 %v938, %v938
        %v971 = vmul.f32 %v939, %v939
        %v972 = vmul.f32 %v940, %v940
        %v973 = vmul.f32 %v941, %v941
        %v974 = vmul.f32 %v942, %v942
        %v975 = vmul.f32 %v943, %v943
        %v976 = vmul.f32 %v944, %v944
        %v977 = vmul.f32 %v945, %v945
        %v978 = vmul.f32 %v946, %v946
        %v979 = vmul.f32 %v947, %v947
        %v980 = vmul.f32 %v948, %v948
        %v981 = vmul.f32 %v949, %v949
        %v982 = vmul.f32 %v950, %v950
        %v983 = vmul.f32 %v951, %v951
        %v984 = vmul.f32 %v952, %v952
        %v985 = vadd.f32 %v953, %v954
        %986 = vadd.xlane.f32.xlu0 %v985
        %v987 = vpop.xlane.xlu0 %986
        %v988 = vadd.f32 %v955, %v956
        %989 = vadd.xlane.f32.xlu0 %v988
        %v990 = vpop.xlane.xlu0 %989
        %v991 = vadd.f32 %v957, %v958
        %992 = vadd.xlane.f32.xlu0 %v991
        %v993 = vpop.xlane.xlu0 %992
        %v994 = vadd.f32 %v959, %v960
        %995 = vadd.xlane.f32.xlu0 %v994
        %v996 = vpop.xlane.xlu0 %995
        %v997 = vadd.f32 %v961, %v962
        %998 = vadd.xlane.f32.xlu0 %v997
        %v999 = vpop.xlane.xlu0 %998
        %v1000 = vadd.f32 %v963, %v964
        %1001 = vadd.xlane.f32.xlu0 %v1000
        %v1002 = vpop.xlane.xlu0 %1001
        %v1003 = vadd.f32 %v965, %v966
        %1004 = vadd.xlane.f32.xlu0 %v1003
        %v1005 = vpop.xlane.xlu0 %1004
        %v1006 = vadd.f32 %v967, %v968
        %1007 = vadd.xlane.f32.xlu0 %v1006
        %v1008 = vpop.xlane.xlu0 %1007
        %v1009 = vadd.f32 %v969, %v970
        %1010 = vadd.xlane.f32.xlu0 %v1009
        %v1011 = vpop.xlane.xlu0 %1010
        %v1012 = vadd.f32 %v971, %v972
        %1013 = vadd.xlane.f32.xlu0 %v1012
        %v1014 = vpop.xlane.xlu0 %1013
        %v1015 = vadd.f32 %v973, %v974
        %1016 = vadd.xlane.f32.xlu0 %v1015
        %v1017 = vpop.xlane.xlu0 %1016
        %v1018 = vadd.f32 %v975, %v976
        %1019 = vadd.xlane.f32.xlu0 %v1018
        %v1020 = vpop.xlane.xlu0 %1019
        %v1021 = vadd.f32 %v977, %v978
        %1022 = vadd.xlane.f32.xlu0 %v1021
        %v1023 = vpop.xlane.xlu0 %1022
        %v1024 = vadd.f32 %v979, %v980
        %1025 = vadd.xlane.f32.xlu0 %v1024
        %v1026 = vpop.xlane.xlu0 %1025
        %v1027 = vadd.f32 %v981, %v982
        %1028 = vadd.xlane.f32.xlu0 %v1027
        %v1029 = vpop.xlane.xlu0 %1028
        %v1030 = vadd.f32 %v983, %v984
        %1031 = vadd.xlane.f32.xlu0 %v1030
        %v1032 = vpop.xlane.xlu0 %1031
        %v1033 = vmax.f32 %v987, 1e-24
        %v1034 = vmax.f32 %v990, 1e-24
        %v1035 = vmax.f32 %v993, 1e-24
        %v1036 = vmax.f32 %v996, 1e-24
        %v1037 = vmax.f32 %v999, 1e-24
        %v1038 = vmax.f32 %v1002, 1e-24
        %v1039 = vmax.f32 %v1005, 1e-24
        %v1040 = vmax.f32 %v1008, 1e-24
        %v1041 = vmax.f32 %v1011, 1e-24
        %v1042 = vmax.f32 %v1014, 1e-24
        %v1043 = vmax.f32 %v1017, 1e-24
        %v1044 = vmax.f32 %v1020, 1e-24
        %v1045 = vmax.f32 %v1023, 1e-24
        %v1046 = vmax.f32 %v1026, 1e-24
        %v1047 = vmax.f32 %v1029, 1e-24
        %v1048 = vmax.f32 %v1032, 1e-24
        %v1049 = vrsqrt.pop %v1033
        %v1050 = vrsqrt.pop %v1034
        %v1051 = vrsqrt.pop %v1035
        %v1052 = vrsqrt.pop %v1036
        %v1053 = vrsqrt.pop %v1037
        %v1054 = vrsqrt.pop %v1038
        %v1055 = vrsqrt.pop %v1039
        %v1056 = vrsqrt.pop %v1040
        %v1057 = vrsqrt.pop %v1041
        %v1058 = vrsqrt.pop %v1042
        %v1059 = vrsqrt.pop %v1043
        %v1060 = vrsqrt.pop %v1044
        %v1061 = vrsqrt.pop %v1045
        %v1062 = vrsqrt.pop %v1046
        %v1063 = vrsqrt.pop %v1047
        %v1064 = vrsqrt.pop %v1048
        %v1065 = vmul.f32 %v921, %v1049
        %v1066 = vmul.f32 %v922, %v1049
        %v1067 = vmul.f32 %v923, %v1050
        %v1068 = vmul.f32 %v924, %v1050
        %v1069 = vmul.f32 %v925, %v1051
        %v1070 = vmul.f32 %v926, %v1051
        %v1071 = vmul.f32 %v927, %v1052
        %v1072 = vmul.f32 %v928, %v1052
        %v1073 = vmul.f32 %v929, %v1053
        %v1074 = vmul.f32 %v930, %v1053
        %v1075 = vmul.f32 %v931, %v1054
        %v1076 = vmul.f32 %v932, %v1054
        %v1077 = vmul.f32 %v933, %v1055
        %v1078 = vmul.f32 %v934, %v1055
        %v1079 = vmul.f32 %v935, %v1056
        %v1080 = vmul.f32 %v936, %v1056
        %v1081 = vmul.f32 %v937, %v1057
        %v1082 = vmul.f32 %v938, %v1057
        %v1083 = vmul.f32 %v939, %v1058
        %v1084 = vmul.f32 %v940, %v1058
        %v1085 = vmul.f32 %v941, %v1059
        %v1086 = vmul.f32 %v942, %v1059
        %v1087 = vmul.f32 %v943, %v1060
        %v1088 = vmul.f32 %v944, %v1060
        %v1089 = vmul.f32 %v945, %v1061
        %v1090 = vmul.f32 %v946, %v1061
        %v1091 = vmul.f32 %v947, %v1062
        %v1092 = vmul.f32 %v948, %v1062
        %v1093 = vmul.f32 %v949, %v1063
        %v1094 = vmul.f32 %v950, %v1063
        %v1095 = vmul.f32 %v951, %v1064
        %v1096 = vmul.f32 %v952, %v1064
        %v1097 = vld [vmem:[%s6] sm:$0x3]
        %v1099 = vlaneseq
        %v1100 = vshrl.u32 %v1099, 7
        %v1101 = vsub.s32 0, %v1100
        %v1102 = vrot.slane %v1097, %v1101
        %v1103 = vlaneseq
        %v1104 = vshrl.u32 %v1103, 7
        %v1105 = vsub.s32 1, %v1104
        %v1106 = vrot.slane %v1097, %v1105
        %v1109 = vmul.f32 %v1065, %v1102
        %v1110 = vmul.f32 %v1066, %v1106
        %v1111 = vmul.f32 %v1067, %v1102
        %v1112 = vmul.f32 %v1068, %v1106
        %v1113 = vmul.f32 %v1069, %v1102
        %v1114 = vmul.f32 %v1070, %v1106
        %v1115 = vmul.f32 %v1071, %v1102
        %v1116 = vmul.f32 %v1072, %v1106
        %v1117 = vmul.f32 %v1073, %v1102
        %v1118 = vmul.f32 %v1074, %v1106
        %v1119 = vmul.f32 %v1075, %v1102
        %v1120 = vmul.f32 %v1076, %v1106
        %v1121 = vmul.f32 %v1077, %v1102
        %v1122 = vmul.f32 %v1078, %v1106
        %v1123 = vmul.f32 %v1079, %v1102
        %v1124 = vmul.f32 %v1080, %v1106
        %v1125 = vmul.f32 %v1081, %v1102
        %v1126 = vmul.f32 %v1082, %v1106
        %v1127 = vmul.f32 %v1083, %v1102
        %v1128 = vmul.f32 %v1084, %v1106
        %v1129 = vmul.f32 %v1085, %v1102
        %v1130 = vmul.f32 %v1086, %v1106
        %v1131 = vmul.f32 %v1087, %v1102
        %v1132 = vmul.f32 %v1088, %v1106
        %v1133 = vmul.f32 %v1089, %v1102
        %v1134 = vmul.f32 %v1090, %v1106
        %v1135 = vmul.f32 %v1091, %v1102
        %v1136 = vmul.f32 %v1092, %v1106
        %v1137 = vmul.f32 %v1093, %v1102
        %v1138 = vmul.f32 %v1094, %v1106
        %v1139 = vmul.f32 %v1095, %v1102
        %v1140 = vmul.f32 %v1096, %v1106
        %v1141 = vadd.f32 %v1109, %v1110
        %1142 = vadd.xlane.f32.xlu0 %v1141
        %v1143 = vpop.xlane.xlu0 %1142
        %v1144 = vadd.f32 %v1111, %v1112
        %1145 = vadd.xlane.f32.xlu0 %v1144
        %v1146 = vpop.xlane.xlu0 %1145
        %v1147 = vadd.f32 %v1113, %v1114
        %1148 = vadd.xlane.f32.xlu0 %v1147
        %v1149 = vpop.xlane.xlu0 %1148
        %v1150 = vadd.f32 %v1115, %v1116
        %1151 = vadd.xlane.f32.xlu0 %v1150
        %v1152 = vpop.xlane.xlu0 %1151
        %v1153 = vadd.f32 %v1117, %v1118
        %1154 = vadd.xlane.f32.xlu0 %v1153
        %v1155 = vpop.xlane.xlu0 %1154
        %v1156 = vadd.f32 %v1119, %v1120
        %1157 = vadd.xlane.f32.xlu0 %v1156
        %v1158 = vpop.xlane.xlu0 %1157
        %v1159 = vadd.f32 %v1121, %v1122
        %1160 = vadd.xlane.f32.xlu0 %v1159
        %v1161 = vpop.xlane.xlu0 %1160
        %v1162 = vadd.f32 %v1123, %v1124
        %1163 = vadd.xlane.f32.xlu0 %v1162
        %v1164 = vpop.xlane.xlu0 %1163
        %v1165 = vadd.f32 %v1125, %v1126
        %1166 = vadd.xlane.f32.xlu0 %v1165
        %v1167 = vpop.xlane.xlu0 %1166
        %v1168 = vadd.f32 %v1127, %v1128
        %1169 = vadd.xlane.f32.xlu0 %v1168
        %v1170 = vpop.xlane.xlu0 %1169
        %v1171 = vadd.f32 %v1129, %v1130
        %1172 = vadd.xlane.f32.xlu0 %v1171
        %v1173 = vpop.xlane.xlu0 %1172
        %v1174 = vadd.f32 %v1131, %v1132
        %1175 = vadd.xlane.f32.xlu0 %v1174
        %v1176 = vpop.xlane.xlu0 %1175
        %v1177 = vadd.f32 %v1133, %v1134
        %1178 = vadd.xlane.f32.xlu0 %v1177
        %v1179 = vpop.xlane.xlu0 %1178
        %v1180 = vadd.f32 %v1135, %v1136
        %1181 = vadd.xlane.f32.xlu0 %v1180
        %v1182 = vpop.xlane.xlu0 %1181
        %v1183 = vadd.f32 %v1137, %v1138
        %1184 = vadd.xlane.f32.xlu0 %v1183
        %v1185 = vpop.xlane.xlu0 %1184
        %v1186 = vadd.f32 %v1139, %v1140
        %1187 = vadd.xlane.f32.xlu0 %v1186
        %v1188 = vpop.xlane.xlu0 %1187
        %v1189 = vld [vmem:[%s491] sm:$0xff]
        %v1190 = vld [vmem:[%s491 + $0x8] sm:$0xff]
        %v1191 = vld [vmem:[%s491 + $0x10] sm:$0xff]
        %v1192 = vld [vmem:[%s491 + $0x18] sm:$0xff]
        %v1193 = vld [vmem:[%s491 + $0x20] sm:$0xff]
        %v1194 = vld [vmem:[%s491 + $0x28] sm:$0xff]
        %v1195 = vld [vmem:[%s491 + $0x30] sm:$0xff]
        %v1196 = vld [vmem:[%s491 + $0x38] sm:$0xff]
        %v1197 = vld [vmem:[%s491 + $0x40] sm:$0xff]
        %v1198 = vld [vmem:[%s491 + $0x48] sm:$0xff]
        %v1199 = vld [vmem:[%s491 + $0x50] sm:$0xff]
        %v1200 = vld [vmem:[%s491 + $0x58] sm:$0xff]
        %v1201 = vld [vmem:[%s491 + $0x60] sm:$0xff]
        %v1202 = vld [vmem:[%s491 + $0x68] sm:$0xff]
        %v1203 = vld [vmem:[%s491 + $0x70] sm:$0xff]
        %v1204 = vld [vmem:[%s491 + $0x78] sm:$0xff]
        %v1205 = vld [vmem:[%s7] sm:$0xf]
        %v1206 = vld [vmem:[%s7 + $0x4] sm:$0xf]
        %v1207 = vld [vmem:[%s7 + $0x8] sm:$0xf]
        %v1208 = vld [vmem:[%s7 + $0xc] sm:$0xf]
        %v1209 = vld [vmem:[%s7 + $0x10] sm:$0xf]
        %v1210 = vld [vmem:[%s7 + $0x14] sm:$0xf]
        %v1211 = vld [vmem:[%s7 + $0x18] sm:$0xf]
        %v1212 = vld [vmem:[%s7 + $0x1c] sm:$0xf]
        %v1213 = vld [vmem:[%s7 + $0x20] sm:$0xf]
        %v1214 = vld [vmem:[%s7 + $0x24] sm:$0xf]
        %v1215 = vld [vmem:[%s7 + $0x28] sm:$0xf]
        %v1216 = vld [vmem:[%s7 + $0x2c] sm:$0xf]
        %v1217 = vld [vmem:[%s7 + $0x30] sm:$0xf]
        %v1218 = vld [vmem:[%s7 + $0x34] sm:$0xf]
        %v1219 = vld [vmem:[%s7 + $0x38] sm:$0xf]
        %v1220 = vld [vmem:[%s7 + $0x3c] sm:$0xf]
        %v1221 = vld [vmem:[%s7 + $0x40] sm:$0xf]
        %v1222 = vld [vmem:[%s7 + $0x44] sm:$0xf]
        %v1223 = vld [vmem:[%s7 + $0x48] sm:$0xf]
        %v1224 = vld [vmem:[%s7 + $0x4c] sm:$0xf]
        %v1225 = vld [vmem:[%s7 + $0x50] sm:$0xf]
        %v1226 = vld [vmem:[%s7 + $0x54] sm:$0xf]
        %v1227 = vld [vmem:[%s7 + $0x58] sm:$0xf]
        %v1228 = vld [vmem:[%s7 + $0x5c] sm:$0xf]
        %v1229 = vld [vmem:[%s7 + $0x60] sm:$0xf]
        %v1230 = vld [vmem:[%s7 + $0x64] sm:$0xf]
        %v1231 = vld [vmem:[%s7 + $0x68] sm:$0xf]
        %v1232 = vld [vmem:[%s7 + $0x6c] sm:$0xf]
        %v1233 = vld [vmem:[%s7 + $0x70] sm:$0xf]
        %v1234 = vld [vmem:[%s7 + $0x74] sm:$0xf]
        %v1235 = vld [vmem:[%s7 + $0x78] sm:$0xf]
        %v1236 = vld [vmem:[%s7 + $0x7c] sm:$0xf]
        %v1237 = vpack.c.bf16 %v847, %v843
        %v1238 = vpack.c.bf16 %v849, %v845
        %v1239 = vpack.c.bf16 %v857, %v853
        %v1240 = vpack.c.bf16 %v859, %v855
        %v1241 = vpack.c.bf16 %v867, %v863
        %v1242 = vpack.c.bf16 %v869, %v865
        %v1243 = vpack.c.bf16 %v877, %v873
        %v1244 = vpack.c.bf16 %v879, %v875
        %v1245 = vpack.c.bf16 %v887, %v883
        %v1246 = vpack.c.bf16 %v889, %v885
        %v1247 = vpack.c.bf16 %v897, %v893
        %v1248 = vpack.c.bf16 %v899, %v895
        %v1249 = vpack.c.bf16 %v907, %v903
        %v1250 = vpack.c.bf16 %v909, %v905
        %v1251 = vpack.c.bf16 %v917, %v913
        %v1252 = vpack.c.bf16 %v919, %v915
        %v1253 = vld [vmem:[%s8] sm:$0xf]
        %v1254 = vld [vmem:[%s8 + $0x4] sm:$0xf]
        %v1255 = vld [vmem:[%s8 + $0x8] sm:$0xf]
        %v1256 = vld [vmem:[%s8 + $0xc] sm:$0xf]
        %v1257 = vld [vmem:[%s8 + $0x10] sm:$0xf]
        %v1258 = vld [vmem:[%s8 + $0x14] sm:$0xf]
        %v1259 = vld [vmem:[%s8 + $0x18] sm:$0xf]
        %v1260 = vld [vmem:[%s8 + $0x1c] sm:$0xf]
        %v1261 = vld [vmem:[%s8 + $0x20] sm:$0xf]
        %v1262 = vld [vmem:[%s8 + $0x24] sm:$0xf]
        %v1263 = vld [vmem:[%s8 + $0x28] sm:$0xf]
        %v1264 = vld [vmem:[%s8 + $0x2c] sm:$0xf]
        %v1265 = vld [vmem:[%s8 + $0x30] sm:$0xf]
        %v1266 = vld [vmem:[%s8 + $0x34] sm:$0xf]
        %v1267 = vld [vmem:[%s8 + $0x38] sm:$0xf]
        %v1268 = vld [vmem:[%s8 + $0x3c] sm:$0xf]
        %v1269 = vld [vmem:[%s8 + $0x40] sm:$0xf]
        %v1270 = vld [vmem:[%s8 + $0x44] sm:$0xf]
        %v1271 = vld [vmem:[%s8 + $0x48] sm:$0xf]
        %v1272 = vld [vmem:[%s8 + $0x4c] sm:$0xf]
        %v1273 = vld [vmem:[%s8 + $0x50] sm:$0xf]
        %v1274 = vld [vmem:[%s8 + $0x54] sm:$0xf]
        %v1275 = vld [vmem:[%s8 + $0x58] sm:$0xf]
        %v1276 = vld [vmem:[%s8 + $0x5c] sm:$0xf]
        %v1277 = vld [vmem:[%s8 + $0x60] sm:$0xf]
        %v1278 = vld [vmem:[%s8 + $0x64] sm:$0xf]
        %v1279 = vld [vmem:[%s8 + $0x68] sm:$0xf]
        %v1280 = vld [vmem:[%s8 + $0x6c] sm:$0xf]
        %v1281 = vld [vmem:[%s8 + $0x70] sm:$0xf]
        %v1282 = vld [vmem:[%s8 + $0x74] sm:$0xf]
        %v1283 = vld [vmem:[%s8 + $0x78] sm:$0xf]
        %v1284 = vld [vmem:[%s8 + $0x7c] sm:$0xf]
        %v1317 = vunpack.c.l.b16 %v1253
        %v1318 = vunpack.c.l.b16 %v1254
        %v1319 = vunpack.c.l.b16 %v1255
        %v1320 = vunpack.c.l.b16 %v1256
        %v1321 = vunpack.c.l.b16 %v1257
        %v1322 = vunpack.c.l.b16 %v1258
        %v1323 = vunpack.c.l.b16 %v1259
        %v1324 = vunpack.c.l.b16 %v1260
        %v1325 = vunpack.c.l.b16 %v1261
        %v1326 = vunpack.c.l.b16 %v1262
        %v1327 = vunpack.c.l.b16 %v1263
        %v1328 = vunpack.c.l.b16 %v1264
        %v1329 = vunpack.c.l.b16 %v1265
        %v1330 = vunpack.c.l.b16 %v1266
        %v1331 = vunpack.c.l.b16 %v1267
        %v1332 = vunpack.c.l.b16 %v1268
        %v1333 = vunpack.c.l.b16 %v1269
        %v1334 = vunpack.c.l.b16 %v1270
        %v1335 = vunpack.c.l.b16 %v1271
        %v1336 = vunpack.c.l.b16 %v1272
        %v1337 = vunpack.c.l.b16 %v1273
        %v1338 = vunpack.c.l.b16 %v1274
        %v1339 = vunpack.c.l.b16 %v1275
        %v1340 = vunpack.c.l.b16 %v1276
        %v1341 = vunpack.c.l.b16 %v1277
        %v1342 = vunpack.c.l.b16 %v1278
        %v1343 = vunpack.c.l.b16 %v1279
        %v1344 = vunpack.c.l.b16 %v1280
        %v1345 = vunpack.c.l.b16 %v1281
        %v1346 = vunpack.c.l.b16 %v1282
        %v1347 = vunpack.c.l.b16 %v1283
        %v1348 = vunpack.c.l.b16 %v1284
        %v1349 = vpack.c.b16 %v1318, %v1317
        %v1350 = vpack.c.b16 %v1320, %v1319
        %v1351 = vpack.c.b16 %v1322, %v1321
        %v1352 = vpack.c.b16 %v1324, %v1323
        %v1353 = vpack.c.b16 %v1326, %v1325
        %v1354 = vpack.c.b16 %v1328, %v1327
        %v1355 = vpack.c.b16 %v1330, %v1329
        %v1356 = vpack.c.b16 %v1332, %v1331
        %v1357 = vpack.c.b16 %v1334, %v1333
        %v1358 = vpack.c.b16 %v1336, %v1335
        %v1359 = vpack.c.b16 %v1338, %v1337
        %v1360 = vpack.c.b16 %v1340, %v1339
        %v1361 = vpack.c.b16 %v1342, %v1341
        %v1362 = vpack.c.b16 %v1344, %v1343
        %v1363 = vpack.c.b16 %v1346, %v1345
        %v1364 = vpack.c.b16 %v1348, %v1347
        %1381 = vmatprep.subr.bf16.mxu0 0
        %1382 = vmatpush1.bf16.msra.mxu0 %v1356
        %1383 = vmatprep.subr.bf16.mxu0 0
        %1384 = vmatpush1.bf16.msra.mxu0 %v1355
        %1385 = vmatprep.subr.bf16.mxu0 0
        %1386 = vmatpush1.bf16.msra.mxu0 %v1354
        %1387 = vmatprep.subr.bf16.mxu0 0
        %1388 = vmatpush1.bf16.msra.mxu0 %v1353
        %1389 = vmatprep.subr.bf16.mxu0 0
        %1390 = vmatpush1.bf16.msra.mxu0 %v1352
        %1391 = vmatprep.subr.bf16.mxu0 0
        %1392 = vmatpush1.bf16.msra.mxu0 %v1351
        %1393 = vmatprep.subr.bf16.mxu0 0
        %1394 = vmatpush1.bf16.msra.mxu0 %v1350
        %1395 = vmatprep.subr.bf16.mxu0 0
        %1396 = vmatpush1.bf16.msra.mxu0 %v1349
        %1397 = vmatprep.subr.bf16.mxu0 0
        %1398 = vmatpush2.bf16.msra.mxu0 %v1364
        %1399 = vmatprep.subr.bf16.mxu0 0
        %1400 = vmatpush2.bf16.msra.mxu0 %v1363
        %1401 = vmatprep.subr.bf16.mxu0 0
        %1402 = vmatpush2.bf16.msra.mxu0 %v1362
        %1403 = vmatprep.subr.bf16.mxu0 0
        %1404 = vmatpush2.bf16.msra.mxu0 %v1361
        %1405 = vmatprep.subr.bf16.mxu0 0
        %1406 = vmatpush2.bf16.msra.mxu0 %v1360
        %1407 = vmatprep.subr.bf16.mxu0 0
        %1408 = vmatpush2.bf16.msra.mxu0 %v1359
        %1409 = vmatprep.subr.bf16.mxu0 0
        %1410 = vmatpush2.bf16.msra.mxu0 %v1358
        %1411 = vmatprep.subr.bf16.mxu0 0
        %1412 = vmatpush2.bf16.msra.mxu0 %v1357
        %1413 = vmatprep.mubr.bf16.mxu0 %v1238
        %1414 = vmatmul.mubr.bf16.gmra.mxu0 %v1237
        %v1415 = vpop.f32.mrf.mxu0
        %v1416 = vadd.f32 0.0, %v1415
        %v1417 = vpop.f32.mrf.mxu0
        %v1418 = vpop.f32.mrf.mxu0
        %v1419 = vadd.f32 0.0, %v1418
        %v1420 = vpop.f32.mrf.mxu0
        %1421 = vmatprep.mubr.bf16.mxu0 %v1240
        %1422 = vmatmul.mubr.bf16.gmra.mxu0 %v1239
        %v1423 = vpop.f32.mrf.mxu0
        %v1424 = vadd.f32 0.0, %v1423
        %v1425 = vpop.f32.mrf.mxu0
        %v1426 = vpop.f32.mrf.mxu0
        %v1427 = vadd.f32 0.0, %v1426
        %v1428 = vpop.f32.mrf.mxu0
        %1429 = vmatprep.mubr.bf16.mxu0 %v1242
        %1430 = vmatmul.mubr.bf16.gmra.mxu0 %v1241
        %v1431 = vpop.f32.mrf.mxu0
        %v1432 = vadd.f32 0.0, %v1431
        %v1433 = vpop.f32.mrf.mxu0
        %v1434 = vpop.f32.mrf.mxu0
        %v1435 = vadd.f32 0.0, %v1434
        %v1436 = vpop.f32.mrf.mxu0
        %1437 = vmatprep.mubr.bf16.mxu0 %v1244
        %1438 = vmatmul.mubr.bf16.gmra.mxu0 %v1243
        %v1439 = vpop.f32.mrf.mxu0
        %v1440 = vadd.f32 0.0, %v1439
        %v1441 = vpop.f32.mrf.mxu0
        %v1442 = vpop.f32.mrf.mxu0
        %v1443 = vadd.f32 0.0, %v1442
        %v1444 = vpop.f32.mrf.mxu0
        %1445 = vmatprep.mubr.bf16.mxu0 %v1246
        %1446 = vmatmul.mubr.bf16.gmra.mxu0 %v1245
        %v1447 = vpop.f32.mrf.mxu0
        %v1448 = vadd.f32 0.0, %v1447
        %v1449 = vpop.f32.mrf.mxu0
        %v1450 = vpop.f32.mrf.mxu0
        %v1451 = vadd.f32 0.0, %v1450
        %v1452 = vpop.f32.mrf.mxu0
        %1453 = vmatprep.mubr.bf16.mxu0 %v1248
        %1454 = vmatmul.mubr.bf16.gmra.mxu0 %v1247
        %v1455 = vpop.f32.mrf.mxu0
        %v1456 = vadd.f32 0.0, %v1455
        %v1457 = vpop.f32.mrf.mxu0
        %v1458 = vpop.f32.mrf.mxu0
        %v1459 = vadd.f32 0.0, %v1458
        %v1460 = vpop.f32.mrf.mxu0
        %1461 = vmatprep.mubr.bf16.mxu0 %v1250
        %1462 = vmatmul.mubr.bf16.gmra.mxu0 %v1249
        %v1463 = vpop.f32.mrf.mxu0
        %v1464 = vadd.f32 0.0, %v1463
        %v1465 = vpop.f32.mrf.mxu0
        %v1466 = vpop.f32.mrf.mxu0
        %v1467 = vadd.f32 0.0, %v1466
        %v1468 = vpop.f32.mrf.mxu0
        %1469 = vmatprep.mubr.bf16.mxu0 %v1252
        %1470 = vmatmul.mubr.bf16.gmra.mxu0 %v1251
        %v1471 = vpop.f32.mrf.mxu0
        %v1472 = vadd.f32 0.0, %v1471
        %v1473 = vpop.f32.mrf.mxu0
        %v1474 = vpop.f32.mrf.mxu0
        %v1475 = vadd.f32 0.0, %v1474
        %v1476 = vpop.f32.mrf.mxu0
        %1477 = vdwg.mxu0
        %v1494 = vunpack.c.l.b16 %v1189
        %v1495 = vunpack.c.h.b16 %v1189
        %v1496 = vunpack.c.l.b16 %v1190
        %v1497 = vunpack.c.h.b16 %v1190
        %v1498 = vunpack.c.l.b16 %v1191
        %v1499 = vunpack.c.h.b16 %v1191
        %v1500 = vunpack.c.l.b16 %v1192
        %v1501 = vunpack.c.h.b16 %v1192
        %v1502 = vunpack.c.l.b16 %v1193
        %v1503 = vunpack.c.h.b16 %v1193
        %v1504 = vunpack.c.l.b16 %v1194
        %v1505 = vunpack.c.h.b16 %v1194
        %v1506 = vunpack.c.l.b16 %v1195
        %v1507 = vunpack.c.h.b16 %v1195
        %v1508 = vunpack.c.l.b16 %v1196
        %v1509 = vunpack.c.h.b16 %v1196
        %v1510 = vunpack.c.l.b16 %v1197
        %v1511 = vunpack.c.h.b16 %v1197
        %v1512 = vunpack.c.l.b16 %v1198
        %v1513 = vunpack.c.h.b16 %v1198
        %v1514 = vunpack.c.l.b16 %v1199
        %v1515 = vunpack.c.h.b16 %v1199
        %v1516 = vunpack.c.l.b16 %v1200
        %v1517 = vunpack.c.h.b16 %v1200
        %v1518 = vunpack.c.l.b16 %v1201
        %v1519 = vunpack.c.h.b16 %v1201
        %v1520 = vunpack.c.l.b16 %v1202
        %v1521 = vunpack.c.h.b16 %v1202
        %v1522 = vunpack.c.l.b16 %v1203
        %v1523 = vunpack.c.h.b16 %v1203
        %v1524 = vunpack.c.l.b16 %v1204
        %v1525 = vunpack.c.h.b16 %v1204
        %v1526 = vpack.c.b16 %v1496, %v1494
        %v1527 = vpack.c.b16 %v1497, %v1495
        %v1528 = vpack.c.b16 %v1500, %v1498
        %v1529 = vpack.c.b16 %v1501, %v1499
        %v1530 = vpack.c.b16 %v1504, %v1502
        %v1531 = vpack.c.b16 %v1505, %v1503
        %v1532 = vpack.c.b16 %v1508, %v1506
        %v1533 = vpack.c.b16 %v1509, %v1507
        %v1534 = vpack.c.b16 %v1512, %v1510
        %v1535 = vpack.c.b16 %v1513, %v1511
        %v1536 = vpack.c.b16 %v1516, %v1514
        %v1537 = vpack.c.b16 %v1517, %v1515
        %v1538 = vpack.c.b16 %v1520, %v1518
        %v1539 = vpack.c.b16 %v1521, %v1519
        %v1540 = vpack.c.b16 %v1524, %v1522
        %v1541 = vpack.c.b16 %v1525, %v1523
        %v1590 = vunpack.c.l.b16 %v1205
        %v1591 = vunpack.c.l.b16 %v1206
        %v1592 = vunpack.c.l.b16 %v1207
        %v1593 = vunpack.c.l.b16 %v1208
        %v1594 = vunpack.c.l.b16 %v1209
        %v1595 = vunpack.c.l.b16 %v1210
        %v1596 = vunpack.c.l.b16 %v1211
        %v1597 = vunpack.c.l.b16 %v1212
        %v1598 = vunpack.c.l.b16 %v1213
        %v1599 = vunpack.c.l.b16 %v1214
        %v1600 = vunpack.c.l.b16 %v1215
        %v1601 = vunpack.c.l.b16 %v1216
        %v1602 = vunpack.c.l.b16 %v1217
        %v1603 = vunpack.c.l.b16 %v1218
        %v1604 = vunpack.c.l.b16 %v1219
        %v1605 = vunpack.c.l.b16 %v1220
        %v1606 = vunpack.c.l.b16 %v1221
        %v1607 = vunpack.c.l.b16 %v1222
        %v1608 = vunpack.c.l.b16 %v1223
        %v1609 = vunpack.c.l.b16 %v1224
        %v1610 = vunpack.c.l.b16 %v1225
        %v1611 = vunpack.c.l.b16 %v1226
        %v1612 = vunpack.c.l.b16 %v1227
        %v1613 = vunpack.c.l.b16 %v1228
        %v1614 = vunpack.c.l.b16 %v1229
        %v1615 = vunpack.c.l.b16 %v1230
        %v1616 = vunpack.c.l.b16 %v1231
        %v1617 = vunpack.c.l.b16 %v1232
        %v1618 = vunpack.c.l.b16 %v1233
        %v1619 = vunpack.c.l.b16 %v1234
        %v1620 = vunpack.c.l.b16 %v1235
        %v1621 = vunpack.c.l.b16 %v1236
        %v1622 = vpack.c.b16 %v1591, %v1590
        %v1623 = vpack.c.b16 %v1593, %v1592
        %v1624 = vpack.c.b16 %v1595, %v1594
        %v1625 = vpack.c.b16 %v1597, %v1596
        %v1626 = vpack.c.b16 %v1599, %v1598
        %v1627 = vpack.c.b16 %v1601, %v1600
        %v1628 = vpack.c.b16 %v1603, %v1602
        %v1629 = vpack.c.b16 %v1605, %v1604
        %v1630 = vpack.c.b16 %v1607, %v1606
        %v1631 = vpack.c.b16 %v1609, %v1608
        %v1632 = vpack.c.b16 %v1611, %v1610
        %v1633 = vpack.c.b16 %v1613, %v1612
        %v1634 = vpack.c.b16 %v1615, %v1614
        %v1635 = vpack.c.b16 %v1617, %v1616
        %v1636 = vpack.c.b16 %v1619, %v1618
        %v1637 = vpack.c.b16 %v1621, %v1620
        %1654 = vmatprep.subr.bf16.mxu0 0
        %1655 = vmatpush1.bf16.msra.mxu0 %v1629
        %1656 = vmatprep.subr.bf16.mxu0 0
        %1657 = vmatpush1.bf16.msra.mxu0 %v1628
        %1658 = vmatprep.subr.bf16.mxu0 0
        %1659 = vmatpush1.bf16.msra.mxu0 %v1627
        %1660 = vmatprep.subr.bf16.mxu0 0
        %1661 = vmatpush1.bf16.msra.mxu0 %v1626
        %1662 = vmatprep.subr.bf16.mxu0 0
        %1663 = vmatpush1.bf16.msra.mxu0 %v1625
        %1664 = vmatprep.subr.bf16.mxu0 0
        %1665 = vmatpush1.bf16.msra.mxu0 %v1624
        %1666 = vmatprep.subr.bf16.mxu0 0
        %1667 = vmatpush1.bf16.msra.mxu0 %v1623
        %1668 = vmatprep.subr.bf16.mxu0 0
        %1669 = vmatpush1.bf16.msra.mxu0 %v1622
        %1670 = vmatprep.subr.bf16.mxu0 0
        %1671 = vmatpush2.bf16.msra.mxu0 %v1637
        %1672 = vmatprep.subr.bf16.mxu0 0
        %1673 = vmatpush2.bf16.msra.mxu0 %v1636
        %1674 = vmatprep.subr.bf16.mxu0 0
        %1675 = vmatpush2.bf16.msra.mxu0 %v1635
        %1676 = vmatprep.subr.bf16.mxu0 0
        %1677 = vmatpush2.bf16.msra.mxu0 %v1634
        %1678 = vmatprep.subr.bf16.mxu0 0
        %1679 = vmatpush2.bf16.msra.mxu0 %v1633
        %1680 = vmatprep.subr.bf16.mxu0 0
        %1681 = vmatpush2.bf16.msra.mxu0 %v1632
        %1682 = vmatprep.subr.bf16.mxu0 0
        %1683 = vmatpush2.bf16.msra.mxu0 %v1631
        %1684 = vmatprep.subr.bf16.mxu0 0
        %1685 = vmatpush2.bf16.msra.mxu0 %v1630
        %1686 = vmatprep.mubr.bf16.mxu0 %v1527
        %1687 = vmatmul.mubr.bf16.gmra.mxu0 %v1526
        %v1688 = vpop.f32.mrf.mxu0
        %v1689 = vadd.f32 %v1416, %v1688
        %v1690 = vpop.f32.mrf.mxu0
        %v1691 = vpop.f32.mrf.mxu0
        %v1692 = vadd.f32 %v1419, %v1691
        %v1693 = vpop.f32.mrf.mxu0
        %1694 = vmatprep.mubr.bf16.mxu0 %v1529
        %1695 = vmatmul.mubr.bf16.gmra.mxu0 %v1528
        %v1696 = vpop.f32.mrf.mxu0
        %v1697 = vadd.f32 %v1424, %v1696
        %v1698 = vpop.f32.mrf.mxu0
        %v1699 = vpop.f32.mrf.mxu0
        %v1700 = vadd.f32 %v1427, %v1699
        %v1701 = vpop.f32.mrf.mxu0
        %1702 = vmatprep.mubr.bf16.mxu0 %v1531
        %1703 = vmatmul.mubr.bf16.gmra.mxu0 %v1530
        %v1704 = vpop.f32.mrf.mxu0
        %v1705 = vadd.f32 %v1432, %v1704
        %v1706 = vpop.f32.mrf.mxu0
        %v1707 = vpop.f32.mrf.mxu0
        %v1708 = vadd.f32 %v1435, %v1707
        %v1709 = vpop.f32.mrf.mxu0
        %1710 = vmatprep.mubr.bf16.mxu0 %v1533
        %1711 = vmatmul.mubr.bf16.gmra.mxu0 %v1532
        %v1712 = vpop.f32.mrf.mxu0
        %v1713 = vadd.f32 %v1440, %v1712
        %v1714 = vpop.f32.mrf.mxu0
        %v1715 = vpop.f32.mrf.mxu0
        %v1716 = vadd.f32 %v1443, %v1715
        %v1717 = vpop.f32.mrf.mxu0
        %1718 = vmatprep.mubr.bf16.mxu0 %v1535
        %1719 = vmatmul.mubr.bf16.gmra.mxu0 %v1534
        %v1720 = vpop.f32.mrf.mxu0
        %v1721 = vadd.f32 %v1448, %v1720
        %v1722 = vpop.f32.mrf.mxu0
        %v1723 = vpop.f32.mrf.mxu0
        %v1724 = vadd.f32 %v1451, %v1723
        %v1725 = vpop.f32.mrf.mxu0
        %1726 = vmatprep.mubr.bf16.mxu0 %v1537
        %1727 = vmatmul.mubr.bf16.gmra.mxu0 %v1536
        %v1728 = vpop.f32.mrf.mxu0
        %v1729 = vadd.f32 %v1456, %v1728
        %v1730 = vpop.f32.mrf.mxu0
        %v1731 = vpop.f32.mrf.mxu0
        %v1732 = vadd.f32 %v1459, %v1731
        %v1733 = vpop.f32.mrf.mxu0
        %1734 = vmatprep.mubr.bf16.mxu0 %v1539
        %1735 = vmatmul.mubr.bf16.gmra.mxu0 %v1538
        %v1736 = vpop.f32.mrf.mxu0
        %v1737 = vadd.f32 %v1464, %v1736
        %v1738 = vpop.f32.mrf.mxu0
        %v1739 = vpop.f32.mrf.mxu0
        %v1740 = vadd.f32 %v1467, %v1739
        %v1741 = vpop.f32.mrf.mxu0
        %1742 = vmatprep.mubr.bf16.mxu0 %v1541
        %1743 = vmatmul.mubr.bf16.gmra.mxu0 %v1540
        %v1744 = vpop.f32.mrf.mxu0
        %v1745 = vadd.f32 %v1472, %v1744
        %v1746 = vpop.f32.mrf.mxu0
        %v1747 = vpop.f32.mrf.mxu0
        %v1748 = vadd.f32 %v1475, %v1747
        %v1749 = vpop.f32.mrf.mxu0
        %1750 = vdwg.mxu0
        %v1751 = vld [vmem:[%s498] sm:$0xff]
        %v1752 = vld [vmem:[%s498 + $0x8] sm:$0xff]
        %v1753 = vld [vmem:[%s498 + $0x10] sm:$0xff]
        %v1754 = vld [vmem:[%s498 + $0x18] sm:$0xff]
        %v1755 = vld [vmem:[%s498 + $0x20] sm:$0xff]
        %v1756 = vld [vmem:[%s498 + $0x28] sm:$0xff]
        %v1757 = vld [vmem:[%s498 + $0x30] sm:$0xff]
        %v1758 = vld [vmem:[%s498 + $0x38] sm:$0xff]
        %v1759 = vld [vmem:[%s498 + $0x40] sm:$0xff]
        %v1760 = vld [vmem:[%s498 + $0x48] sm:$0xff]
        %v1761 = vld [vmem:[%s498 + $0x50] sm:$0xff]
        %v1762 = vld [vmem:[%s498 + $0x58] sm:$0xff]
        %v1763 = vld [vmem:[%s498 + $0x60] sm:$0xff]
        %v1764 = vld [vmem:[%s498 + $0x68] sm:$0xff]
        %v1765 = vld [vmem:[%s498 + $0x70] sm:$0xff]
        %v1766 = vld [vmem:[%s498 + $0x78] sm:$0xff]
        %v1767 = vld [vmem:[%s9] sm:$0xf]
        %v1768 = vld [vmem:[%s9 + $0x4] sm:$0xf]
        %v1769 = vld [vmem:[%s9 + $0x8] sm:$0xf]
        %v1770 = vld [vmem:[%s9 + $0xc] sm:$0xf]
        %v1771 = vld [vmem:[%s9 + $0x10] sm:$0xf]
        %v1772 = vld [vmem:[%s9 + $0x14] sm:$0xf]
        %v1773 = vld [vmem:[%s9 + $0x18] sm:$0xf]
        %v1774 = vld [vmem:[%s9 + $0x1c] sm:$0xf]
        %v1775 = vld [vmem:[%s9 + $0x20] sm:$0xf]
        %v1776 = vld [vmem:[%s9 + $0x24] sm:$0xf]
        %v1777 = vld [vmem:[%s9 + $0x28] sm:$0xf]
        %v1778 = vld [vmem:[%s9 + $0x2c] sm:$0xf]
        %v1779 = vld [vmem:[%s9 + $0x30] sm:$0xf]
        %v1780 = vld [vmem:[%s9 + $0x34] sm:$0xf]
        %v1781 = vld [vmem:[%s9 + $0x38] sm:$0xf]
        %v1782 = vld [vmem:[%s9 + $0x3c] sm:$0xf]
        %v1783 = vld [vmem:[%s9 + $0x40] sm:$0xf]
        %v1784 = vld [vmem:[%s9 + $0x44] sm:$0xf]
        %v1785 = vld [vmem:[%s9 + $0x48] sm:$0xf]
        %v1786 = vld [vmem:[%s9 + $0x4c] sm:$0xf]
        %v1787 = vld [vmem:[%s9 + $0x50] sm:$0xf]
        %v1788 = vld [vmem:[%s9 + $0x54] sm:$0xf]
        %v1789 = vld [vmem:[%s9 + $0x58] sm:$0xf]
        %v1790 = vld [vmem:[%s9 + $0x5c] sm:$0xf]
        %v1791 = vld [vmem:[%s9 + $0x60] sm:$0xf]
        %v1792 = vld [vmem:[%s9 + $0x64] sm:$0xf]
        %v1793 = vld [vmem:[%s9 + $0x68] sm:$0xf]
        %v1794 = vld [vmem:[%s9 + $0x6c] sm:$0xf]
        %v1795 = vld [vmem:[%s9 + $0x70] sm:$0xf]
        %v1796 = vld [vmem:[%s9 + $0x74] sm:$0xf]
        %v1797 = vld [vmem:[%s9 + $0x78] sm:$0xf]
        %v1798 = vld [vmem:[%s9 + $0x7c] sm:$0xf]
        %v1815 = vunpack.c.l.b16 %v1751
        %v1816 = vunpack.c.h.b16 %v1751
        %v1817 = vunpack.c.l.b16 %v1752
        %v1818 = vunpack.c.h.b16 %v1752
        %v1819 = vunpack.c.l.b16 %v1753
        %v1820 = vunpack.c.h.b16 %v1753
        %v1821 = vunpack.c.l.b16 %v1754
        %v1822 = vunpack.c.h.b16 %v1754
        %v1823 = vunpack.c.l.b16 %v1755
        %v1824 = vunpack.c.h.b16 %v1755
        %v1825 = vunpack.c.l.b16 %v1756
        %v1826 = vunpack.c.h.b16 %v1756
        %v1827 = vunpack.c.l.b16 %v1757
        %v1828 = vunpack.c.h.b16 %v1757
        %v1829 = vunpack.c.l.b16 %v1758
        %v1830 = vunpack.c.h.b16 %v1758
        %v1831 = vunpack.c.l.b16 %v1759
        %v1832 = vunpack.c.h.b16 %v1759
        %v1833 = vunpack.c.l.b16 %v1760
        %v1834 = vunpack.c.h.b16 %v1760
        %v1835 = vunpack.c.l.b16 %v1761
        %v1836 = vunpack.c.h.b16 %v1761
        %v1837 = vunpack.c.l.b16 %v1762
        %v1838 = vunpack.c.h.b16 %v1762
        %v1839 = vunpack.c.l.b16 %v1763
        %v1840 = vunpack.c.h.b16 %v1763
        %v1841 = vunpack.c.l.b16 %v1764
        %v1842 = vunpack.c.h.b16 %v1764
        %v1843 = vunpack.c.l.b16 %v1765
        %v1844 = vunpack.c.h.b16 %v1765
        %v1845 = vunpack.c.l.b16 %v1766
        %v1846 = vunpack.c.h.b16 %v1766
        %v1847 = vpack.c.b16 %v1817, %v1815
        %v1848 = vpack.c.b16 %v1818, %v1816
        %v1849 = vpack.c.b16 %v1821, %v1819
        %v1850 = vpack.c.b16 %v1822, %v1820
        %v1851 = vpack.c.b16 %v1825, %v1823
        %v1852 = vpack.c.b16 %v1826, %v1824
        %v1853 = vpack.c.b16 %v1829, %v1827
        %v1854 = vpack.c.b16 %v1830, %v1828
        %v1855 = vpack.c.b16 %v1833, %v1831
        %v1856 = vpack.c.b16 %v1834, %v1832
        %v1857 = vpack.c.b16 %v1837, %v1835
        %v1858 = vpack.c.b16 %v1838, %v1836
        %v1859 = vpack.c.b16 %v1841, %v1839
        %v1860 = vpack.c.b16 %v1842, %v1840
        %v1861 = vpack.c.b16 %v1845, %v1843
        %v1862 = vpack.c.b16 %v1846, %v1844
        %v1911 = vunpack.c.l.b16 %v1767
        %v1912 = vunpack.c.l.b16 %v1768
        %v1913 = vunpack.c.l.b16 %v1769
        %v1914 = vunpack.c.l.b16 %v1770
        %v1915 = vunpack.c.l.b16 %v1771
        %v1916 = vunpack.c.l.b16 %v1772
        %v1917 = vunpack.c.l.b16 %v1773
        %v1918 = vunpack.c.l.b16 %v1774
        %v1919 = vunpack.c.l.b16 %v1775
        %v1920 = vunpack.c.l.b16 %v1776
        %v1921 = vunpack.c.l.b16 %v1777
        %v1922 = vunpack.c.l.b16 %v1778
        %v1923 = vunpack.c.l.b16 %v1779
        %v1924 = vunpack.c.l.b16 %v1780
        %v1925 = vunpack.c.l.b16 %v1781
        %v1926 = vunpack.c.l.b16 %v1782
        %v1927 = vunpack.c.l.b16 %v1783
        %v1928 = vunpack.c.l.b16 %v1784
        %v1929 = vunpack.c.l.b16 %v1785
        %v1930 = vunpack.c.l.b16 %v1786
        %v1931 = vunpack.c.l.b16 %v1787
        %v1932 = vunpack.c.l.b16 %v1788
        %v1933 = vunpack.c.l.b16 %v1789
        %v1934 = vunpack.c.l.b16 %v1790
        %v1935 = vunpack.c.l.b16 %v1791
        %v1936 = vunpack.c.l.b16 %v1792
        %v1937 = vunpack.c.l.b16 %v1793
        %v1938 = vunpack.c.l.b16 %v1794
        %v1939 = vunpack.c.l.b16 %v1795
        %v1940 = vunpack.c.l.b16 %v1796
        %v1941 = vunpack.c.l.b16 %v1797
        %v1942 = vunpack.c.l.b16 %v1798
        %v1943 = vpack.c.b16 %v1912, %v1911
        %v1944 = vpack.c.b16 %v1914, %v1913
        %v1945 = vpack.c.b16 %v1916, %v1915
        %v1946 = vpack.c.b16 %v1918, %v1917
        %v1947 = vpack.c.b16 %v1920, %v1919
        %v1948 = vpack.c.b16 %v1922, %v1921
        %v1949 = vpack.c.b16 %v1924, %v1923
        %v1950 = vpack.c.b16 %v1926, %v1925
        %v1951 = vpack.c.b16 %v1928, %v1927
        %v1952 = vpack.c.b16 %v1930, %v1929
        %v1953 = vpack.c.b16 %v1932, %v1931
        %v1954 = vpack.c.b16 %v1934, %v1933
        %v1955 = vpack.c.b16 %v1936, %v1935
        %v1956 = vpack.c.b16 %v1938, %v1937
        %v1957 = vpack.c.b16 %v1940, %v1939
        %v1958 = vpack.c.b16 %v1942, %v1941
        %1975 = vmatprep.subr.bf16.mxu0 0
        %1976 = vmatpush1.bf16.msra.mxu0 %v1950
        %1977 = vmatprep.subr.bf16.mxu0 0
        %1978 = vmatpush1.bf16.msra.mxu0 %v1949
        %1979 = vmatprep.subr.bf16.mxu0 0
        %1980 = vmatpush1.bf16.msra.mxu0 %v1948
        %1981 = vmatprep.subr.bf16.mxu0 0
        %1982 = vmatpush1.bf16.msra.mxu0 %v1947
        %1983 = vmatprep.subr.bf16.mxu0 0
        %1984 = vmatpush1.bf16.msra.mxu0 %v1946
        %1985 = vmatprep.subr.bf16.mxu0 0
        %1986 = vmatpush1.bf16.msra.mxu0 %v1945
        %1987 = vmatprep.subr.bf16.mxu0 0
        %1988 = vmatpush1.bf16.msra.mxu0 %v1944
        %1989 = vmatprep.subr.bf16.mxu0 0
        %1990 = vmatpush1.bf16.msra.mxu0 %v1943
        %1991 = vmatprep.subr.bf16.mxu0 0
        %1992 = vmatpush2.bf16.msra.mxu0 %v1958
        %1993 = vmatprep.subr.bf16.mxu0 0
        %1994 = vmatpush2.bf16.msra.mxu0 %v1957
        %1995 = vmatprep.subr.bf16.mxu0 0
        %1996 = vmatpush2.bf16.msra.mxu0 %v1956
        %1997 = vmatprep.subr.bf16.mxu0 0
        %1998 = vmatpush2.bf16.msra.mxu0 %v1955
        %1999 = vmatprep.subr.bf16.mxu0 0
        %2000 = vmatpush2.bf16.msra.mxu0 %v1954
        %2001 = vmatprep.subr.bf16.mxu0 0
        %2002 = vmatpush2.bf16.msra.mxu0 %v1953
        %2003 = vmatprep.subr.bf16.mxu0 0
        %2004 = vmatpush2.bf16.msra.mxu0 %v1952
        %2005 = vmatprep.subr.bf16.mxu0 0
        %2006 = vmatpush2.bf16.msra.mxu0 %v1951
        %2007 = vmatprep.mubr.bf16.mxu0 %v1848
        %2008 = vmatmul.mubr.bf16.gmra.mxu0 %v1847
        %v2009 = vpop.f32.mrf.mxu0
        %v2010 = vadd.f32 0.0, %v2009
        %v2011 = vpop.f32.mrf.mxu0
        %v2012 = vpop.f32.mrf.mxu0
        %v2013 = vadd.f32 0.0, %v2012
        %v2014 = vpop.f32.mrf.mxu0
        %2015 = vmatprep.mubr.bf16.mxu0 %v1850
        %2016 = vmatmul.mubr.bf16.gmra.mxu0 %v1849
        %v2017 = vpop.f32.mrf.mxu0
        %v2018 = vadd.f32 0.0, %v2017
        %v2019 = vpop.f32.mrf.mxu0
        %v2020 = vpop.f32.mrf.mxu0
        %v2021 = vadd.f32 0.0, %v2020
        %v2022 = vpop.f32.mrf.mxu0
        %2023 = vmatprep.mubr.bf16.mxu0 %v1852
        %2024 = vmatmul.mubr.bf16.gmra.mxu0 %v1851
        %v2025 = vpop.f32.mrf.mxu0
        %v2026 = vadd.f32 0.0, %v2025
        %v2027 = vpop.f32.mrf.mxu0
        %v2028 = vpop.f32.mrf.mxu0
        %v2029 = vadd.f32 0.0, %v2028
        %v2030 = vpop.f32.mrf.mxu0
        %2031 = vmatprep.mubr.bf16.mxu0 %v1854
        %2032 = vmatmul.mubr.bf16.gmra.mxu0 %v1853
        %v2033 = vpop.f32.mrf.mxu0
        %v2034 = vadd.f32 0.0, %v2033
        %v2035 = vpop.f32.mrf.mxu0
        %v2036 = vpop.f32.mrf.mxu0
        %v2037 = vadd.f32 0.0, %v2036
        %v2038 = vpop.f32.mrf.mxu0
        %2039 = vmatprep.mubr.bf16.mxu0 %v1856
        %2040 = vmatmul.mubr.bf16.gmra.mxu0 %v1855
        %v2041 = vpop.f32.mrf.mxu0
        %v2042 = vadd.f32 0.0, %v2041
        %v2043 = vpop.f32.mrf.mxu0
        %v2044 = vpop.f32.mrf.mxu0
        %v2045 = vadd.f32 0.0, %v2044
        %v2046 = vpop.f32.mrf.mxu0
        %2047 = vmatprep.mubr.bf16.mxu0 %v1858
        %2048 = vmatmul.mubr.bf16.gmra.mxu0 %v1857
        %v2049 = vpop.f32.mrf.mxu0
        %v2050 = vadd.f32 0.0, %v2049
        %v2051 = vpop.f32.mrf.mxu0
        %v2052 = vpop.f32.mrf.mxu0
        %v2053 = vadd.f32 0.0, %v2052
        %v2054 = vpop.f32.mrf.mxu0
        %2055 = vmatprep.mubr.bf16.mxu0 %v1860
        %2056 = vmatmul.mubr.bf16.gmra.mxu0 %v1859
        %v2057 = vpop.f32.mrf.mxu0
        %v2058 = vadd.f32 0.0, %v2057
        %v2059 = vpop.f32.mrf.mxu0
        %v2060 = vpop.f32.mrf.mxu0
        %v2061 = vadd.f32 0.0, %v2060
        %v2062 = vpop.f32.mrf.mxu0
        %2063 = vmatprep.mubr.bf16.mxu0 %v1862
        %2064 = vmatmul.mubr.bf16.gmra.mxu0 %v1861
        %v2065 = vpop.f32.mrf.mxu0
        %v2066 = vadd.f32 0.0, %v2065
        %v2067 = vpop.f32.mrf.mxu0
        %v2068 = vpop.f32.mrf.mxu0
        %v2069 = vadd.f32 0.0, %v2068
        %v2070 = vpop.f32.mrf.mxu0
        %2071 = vdwg.mxu0
        %v2072 = vadd.f32 %v1689, %v2010
        %v2073 = vadd.f32 %v1692, %v2013
        %v2074 = vadd.f32 %v1697, %v2018
        %v2075 = vadd.f32 %v1700, %v2021
        %v2076 = vadd.f32 %v1705, %v2026
        %v2077 = vadd.f32 %v1708, %v2029
        %v2078 = vadd.f32 %v1713, %v2034
        %v2079 = vadd.f32 %v1716, %v2037
        %v2080 = vadd.f32 %v1721, %v2042
        %v2081 = vadd.f32 %v1724, %v2045
        %v2082 = vadd.f32 %v1729, %v2050
        %v2083 = vadd.f32 %v1732, %v2053
        %v2084 = vadd.f32 %v1737, %v2058
        %v2085 = vadd.f32 %v1740, %v2061
        %v2086 = vadd.f32 %v1745, %v2066
        %v2087 = vadd.f32 %v1748, %v2069
        %v2088 = vld [vmem:[%s10] sm:$0x1]
        %v2090 = vlaneseq
        %v2091 = vshrl.u32 %v2090, 7
        %v2092 = vsub.s32 0, %v2091
        %v2093 = vrot.slane %v2088, %v2092
        %v2095 = vadd.f32 %v2072, %v2093
        %v2096 = vadd.f32 %v2073, %v2093
        %v2097 = vadd.f32 %v2074, %v2093
        %v2098 = vadd.f32 %v2075, %v2093
        %v2099 = vadd.f32 %v2076, %v2093
        %v2100 = vadd.f32 %v2077, %v2093
        %v2101 = vadd.f32 %v2078, %v2093
        %v2102 = vadd.f32 %v2079, %v2093
        %v2103 = vadd.f32 %v2080, %v2093
        %v2104 = vadd.f32 %v2081, %v2093
        %v2105 = vadd.f32 %v2082, %v2093
        %v2106 = vadd.f32 %v2083, %v2093
        %v2107 = vadd.f32 %v2084, %v2093
        %v2108 = vadd.f32 %v2085, %v2093
        %v2109 = vadd.f32 %v2086, %v2093
        %v2110 = vadd.f32 %v2087, %v2093
        %v2111 = vlaneseq
        %v2112 = vand.u32 %v2111, 127
        %vm2113 = vcmp.eq.s32.totalorder %v2112, 4
        %v2114 = vsel %vm2113, %v1143, 0.0
        %v2115 = vsel %vm2113, %v1146, 0.0
        %v2116 = vsel %vm2113, %v1149, 0.0
        %v2117 = vsel %vm2113, %v1152, 0.0
        %v2118 = vsel %vm2113, %v1155, 0.0
        %v2119 = vsel %vm2113, %v1158, 0.0
        %v2120 = vsel %vm2113, %v1161, 0.0
        %v2121 = vsel %vm2113, %v1164, 0.0
        %v2122 = vsel %vm2113, %v1167, 0.0
        %v2123 = vsel %vm2113, %v1170, 0.0
        %v2124 = vsel %vm2113, %v1173, 0.0
        %v2125 = vsel %vm2113, %v1176, 0.0
        %v2126 = vsel %vm2113, %v1179, 0.0
        %v2127 = vsel %vm2113, %v1182, 0.0
        %v2128 = vsel %vm2113, %v1185, 0.0
        %v2129 = vsel %vm2113, %v1188, 0.0
        %v2130 = vadd.f32 %v2095, %v2114
        %v2131 = vadd.f32 %v2096, %v2115
        %v2132 = vadd.f32 %v2097, %v2116
        %v2133 = vadd.f32 %v2098, %v2117
        %v2134 = vadd.f32 %v2099, %v2118
        %v2135 = vadd.f32 %v2100, %v2119
        %v2136 = vadd.f32 %v2101, %v2120
        %v2137 = vadd.f32 %v2102, %v2121
        %v2138 = vadd.f32 %v2103, %v2122
        %v2139 = vadd.f32 %v2104, %v2123
        %v2140 = vadd.f32 %v2105, %v2124
        %v2141 = vadd.f32 %v2106, %v2125
        %v2142 = vadd.f32 %v2107, %v2126
        %v2143 = vadd.f32 %v2108, %v2127
        %v2144 = vadd.f32 %v2109, %v2128
        %v2145 = vadd.f32 %v2110, %v2129
        %vm2146 = vcmask 64512
        %2147 = vst.msk [vmem:[%s504] sm:$0xff] %vm2146, %v2130
        %2148 = vst.msk [vmem:[%s504 + $0x8] sm:$0xff] %vm2146, %v2131
        %2149 = vst.msk [vmem:[%s504 + $0x10] sm:$0xff] %vm2146, %v2132
        %2150 = vst.msk [vmem:[%s504 + $0x18] sm:$0xff] %vm2146, %v2133
        %2151 = vst.msk [vmem:[%s504 + $0x20] sm:$0xff] %vm2146, %v2134
        %2152 = vst.msk [vmem:[%s504 + $0x28] sm:$0xff] %vm2146, %v2135
        %2153 = vst.msk [vmem:[%s504 + $0x30] sm:$0xff] %vm2146, %v2136
        %2154 = vst.msk [vmem:[%s504 + $0x38] sm:$0xff] %vm2146, %v2137
        %2155 = vst.msk [vmem:[%s504 + $0x40] sm:$0xff] %vm2146, %v2138
        %2156 = vst.msk [vmem:[%s504 + $0x48] sm:$0xff] %vm2146, %v2139
        %2157 = vst.msk [vmem:[%s504 + $0x50] sm:$0xff] %vm2146, %v2140
        %2158 = vst.msk [vmem:[%s504 + $0x58] sm:$0xff] %vm2146, %v2141
        %2159 = vst.msk [vmem:[%s504 + $0x60] sm:$0xff] %vm2146, %v2142
        %2160 = vst.msk [vmem:[%s504 + $0x68] sm:$0xff] %vm2146, %v2143
        %2161 = vst.msk [vmem:[%s504 + $0x70] sm:$0xff] %vm2146, %v2144
        %2162 = vst.msk [vmem:[%s504 + $0x78] sm:$0xff] %vm2146, %v2145
        %2163 = vst [vmem:[%s471] sm:$0xff] %v1065
        %2164 = vst [vmem:[%s471 + $0x8] sm:$0xff] %v1066
        %2165 = vst [vmem:[%s471 + $0x10] sm:$0xff] %v1067
        %2166 = vst [vmem:[%s471 + $0x18] sm:$0xff] %v1068
        %2167 = vst [vmem:[%s471 + $0x20] sm:$0xff] %v1069
        %2168 = vst [vmem:[%s471 + $0x28] sm:$0xff] %v1070
        %2169 = vst [vmem:[%s471 + $0x30] sm:$0xff] %v1071
        %2170 = vst [vmem:[%s471 + $0x38] sm:$0xff] %v1072
        %2171 = vst [vmem:[%s471 + $0x40] sm:$0xff] %v1073
        %2172 = vst [vmem:[%s471 + $0x48] sm:$0xff] %v1074
        %2173 = vst [vmem:[%s471 + $0x50] sm:$0xff] %v1075
        %2174 = vst [vmem:[%s471 + $0x58] sm:$0xff] %v1076
        %2175 = vst [vmem:[%s471 + $0x60] sm:$0xff] %v1077
        %2176 = vst [vmem:[%s471 + $0x68] sm:$0xff] %v1078
        %2177 = vst [vmem:[%s471 + $0x70] sm:$0xff] %v1079
        %2178 = vst [vmem:[%s471 + $0x78] sm:$0xff] %v1080
        %2179 = vst [vmem:[%s471 + $0x80] sm:$0xff] %v1081
        %2180 = vst [vmem:[%s471 + $0x88] sm:$0xff] %v1082
        %2181 = vst [vmem:[%s471 + $0x90] sm:$0xff] %v1083
        %2182 = vst [vmem:[%s471 + $0x98] sm:$0xff] %v1084
        %2183 = vst [vmem:[%s471 + $0xa0] sm:$0xff] %v1085
        %2184 = vst [vmem:[%s471 + $0xa8] sm:$0xff] %v1086
        %2185 = vst [vmem:[%s471 + $0xb0] sm:$0xff] %v1087
        %2186 = vst [vmem:[%s471 + $0xb8] sm:$0xff] %v1088
        %2187 = vst [vmem:[%s471 + $0xc0] sm:$0xff] %v1089
        %2188 = vst [vmem:[%s471 + $0xc8] sm:$0xff] %v1090
        %2189 = vst [vmem:[%s471 + $0xd0] sm:$0xff] %v1091
        %2190 = vst [vmem:[%s471 + $0xd8] sm:$0xff] %v1092
        %2191 = vst [vmem:[%s471 + $0xe0] sm:$0xff] %v1093
        %2192 = vst [vmem:[%s471 + $0xe8] sm:$0xff] %v1094
        %2193 = vst [vmem:[%s471 + $0xf0] sm:$0xff] %v1095
        %2194 = vst [vmem:[%s471 + $0xf8] sm:$0xff] %v1096
        %s2195 = smul.u32 16, %s27
        %p2196 = scmp.lt.s32.totalorder %s2195, 63
        %s2197 = scalar_select %p2196, %s2195, 63
        %s2198 = smul.addr %s2197, 8
        %s2199 = scalar_lea.vmem %s11, %s2198
        %s2200 = sand.u32 %s312, 1
        %s2201 = scalar_lea.sflag [#allocation3], %s2200
        %s2202 = sand.u32 %s312, 1
        %s2203 = smul.addr %s2202, 256
        %s2204 = scalar_lea.vmem [#allocation2], %s2203
        // Predicated region
        $region65: #{transformer_var_forward.1} parent=63 // pred_check
          %p2205 = pneg %p296
        $region66: #{transformer_var_forward.1} parent=63 // pred_check_branch
          %2207 = sbr.rel (%p2205) target = $region68
        $region67: #{transformer_var_forward.1} parent=63 // pred_region
          %s2208 = smul.u32 16, %s27
        $region68: #{transformer_var_forward.1} parent=63 // pred_fallthru
          _
        // Predicated region
        $region69: #{transformer_var_forward.1} parent=63 // pred_check
          %p2209 = pneg %p322
        $region70: #{transformer_var_forward.1} parent=63 // pred_check_branch
          %2211 = sbr.rel (%p2209) target = $region72
        $region71: #{transformer_var_forward.1} parent=63 // pred_region
          %s2212 = smul.u32 16, %s27
          %s2214 = ssub.s32 4096, 4096
          %2215 = vsyncadd %s2201, %s2214
          %s2216 = smul.addr %s2212, 2
          %s2217 = smul.addr %s2216, 128
          %s2218 = scalar_lea.hbm %s12, %s2217
          %s2219 = sshll.u32 %s2204, 4
          %s2220 = int_to_ptr.vmem [resolvable:$true] %s2219
          %2225 = dma.vmem_to_hbm [thread:$0]  %s2220, 4096, %s2218, %s2201, 256, 256, 16
        $region72: #{transformer_var_forward.1} parent=63 // pred_fallthru
          _
      $region64: #{transformer_var_forward.1} parent=5 // pred_fallthru
        _
      %p2226 = scmp.le.s32.totalorder 2, %s22
      // Predicated region
      $region73: #{transformer_var_forward.1} parent=5 // pred_check
        %p2227 = pneg %p2226
      $region74: #{transformer_var_forward.1} parent=5 // pred_check_branch
        %2229 = sbr.rel (%p2227) target = $region76
      $region75: #{transformer_var_forward.1} parent=5 // pred_region
        %s2230 = ssub.s32 %s22, 2
        // Predicated region
        $region77: #{transformer_var_forward.1} parent=75 // pred_check
          %p2231 = pneg %p302
        $region78: #{transformer_var_forward.1} parent=75 // pred_check_branch
          %2233 = sbr.rel (%p2231) target = $region80
        $region79: #{transformer_var_forward.1} parent=75 // pred_region
          %s2234 = smul.u32 16, %s28
          %p2235 = scmp.lt.s32.totalorder %s2234, 63
          %s2236 = scalar_select %p2235, %s2234, 63
          %s2237 = smul.addr %s2236, 8
          %s2238 = scalar_lea.vmem %s11, %s2237
        $region80: #{transformer_var_forward.1} parent=75 // pred_fallthru
          _
        // Predicated region
        $region81: #{transformer_var_forward.1} parent=75 // pred_check
          %p2239 = pneg %p328
        $region82: #{transformer_var_forward.1} parent=75 // pred_check_branch
          %2241 = sbr.rel (%p2239) target = $region84
        $region83: #{transformer_var_forward.1} parent=75 // pred_region
          %s2242 = sand.u32 %s313, 1
          %s2243 = scalar_lea.sflag [#allocation3], %s2242
          %s2244 = sand.u32 %s313, 1
          %s2245 = smul.addr %s2244, 256
          %s2246 = scalar_lea.vmem [#allocation2], %s2245
          %2247 = dma.done %s2243, 4096
        $region84: #{transformer_var_forward.1} parent=75 // pred_fallthru
          _
      $region76: #{transformer_var_forward.1} parent=5 // pred_fallthru
        _
    $region6: #{transformer_var_forward.1} parent=1 // loop_footer
      %s26 = sadd.s32 1, %s22
    $region7: #{transformer_var_forward.1} parent=1 // loop_footer_branch
      %21 = sbr.rel target = $region3
    $region8: #{transformer_var_forward.1} parent=1 // loop_exit
      _
    %2248 = vsyncpa [#allocation3], 1
    %s2249 = scalar_lea.sflag [#allocation3], 1
    %2250 = vsyncpa %s2249, 1

</llo_original>
